<compile_context>
chip_gen: v7x
topology: tpu7x:2x2x1
jax: 0.10.0
libtpu: 0.0.40
codegen_flags: <defaults>
</compile_context>

<pallas_src>
import functools

import jax
import jax.numpy as jnp
from jax import lax
from jax.experimental import pallas as pl
from jax.experimental.pallas import tpu as pltpu


def _mmd_kernel(xi_ref, xjt_ref, yi_ref, yjt_ref,
                xni_ref, xnj_ref, yni_ref, ynj_ref,
                o_ref, *, inv2s, exp_dtype):
    """Grid point (i, j): partial sums of the exp terms for row-block i vs col-block j."""
    i = pl.program_id(0)
    j = pl.program_id(1)

    # Output block index depends only on i -> resident across the trailing j axis.
    @pl.when(j == 0)
    def _():
        o_ref[...] = jnp.zeros_like(o_ref)

    def _exp(z):
        if jnp.dtype(exp_dtype) == jnp.dtype(jnp.float32):
            return jnp.exp(z)
        # Optional bf16 EUP path (v6e/v7x); sums stay in f32.
        return jnp.exp(z.astype(exp_dtype)).astype(jnp.float32)

    contract = (((1,), (0,)), ((), ()))  # canonical (m,k)x(k,n) -> no RHS transpose

    xi = xi_ref[...]     # (blk, D) native dtype
    yjt = yjt_ref[...]   # (D, blk) native dtype
    xni = xni_ref[...]   # (blk, 1) f32, already scaled by 1/(2*sig2)
    ynj = ynj_ref[...]   # (1, blk) f32, already scaled by 1/(2*sig2)

    # ---- XY term: full (i, j) grid. Stream dot -> exp -> reduce -> accumulate.
    xy = lax.dot_general(xi, yjt, contract, preferred_element_type=jnp.float32)
    o_ref[...] += -2.0 * jnp.sum(_exp(xy * inv2s - xni - ynj))

    # ---- XX and YY terms: symmetric, so only upper-triangular blocks are computed.
    @pl.when(j >= i)
    def _():
        xjt = xjt_ref[...]   # (D, blk)
        yi = yi_ref[...]     # (blk, D)
        xnj = xnj_ref[...]   # (1, blk)
        yni = yni_ref[...]   # (blk, 1)

        xx = lax.dot_general(xi, xjt, contract, preferred_element_type=jnp.float32)
        exx = _exp(xx * inv2s - xni - xnj)
        yy = lax.dot_general(yi, yjt, contract, preferred_element_type=jnp.float32)
        eyy = _exp(yy * inv2s - yni - ynj)

        # Diagonal blocks count once, off-diagonal blocks twice (K is symmetric).
        w = jnp.where(i == j, 1.0, 2.0)
        o_ref[...] += w * jnp.sum(exx + eyy)   # single XLU reduction for both terms


def _pick_block(n):
    """Row-block size: 128-aligned (lane-dim constraint of the transposed/j-side specs),
    MXU-filling (>=256 preferred on v6e/v7x), and never collapsing the grid (gi >= 2 so
    the 'parallel' i axis can shard across v7x's two TensorCores)."""
    for b in (512, 256):
        if n % b == 0 and n // b >= 4:
            return b
    for b in (256, 128):
        if n % b == 0 and n // b >= 2:
            return b
    if n % 128 == 0:
        return 128
    # Fallback: one full-extent block (allowed when block == full dim).
    return n


def mmd_loss(X, Y, sig2=1.0, block=None, matmul_dtype=None, exp_dtype=jnp.float32):
    """Pallas implementation of MMDLoss()(X, Y) with the default se_kernel (prec=None)."""
    assert X.ndim == 2 and Y.ndim == 2
    N, D = X.shape
    assert Y.shape == (N, D), "K(X,X)+K(Y,Y)-2K(X,Y) requires matching shapes"

    blk = _pick_block(N) if block is None else block
    assert N % blk == 0
    assert blk == N or blk % 128 == 0, "lane-dim blocks must be 128-aligned (or full N)"
    gi = gj = N // blk

    inv2s = 1.0 / (2.0 * float(sig2))

    # Row norms (mean of squares over features), hoisted out of the kernel and pre-scaled.
    x32 = X.astype(jnp.float32)
    y32 = Y.astype(jnp.float32)
    xn = jnp.mean(x32 * x32, axis=1) * inv2s   # (N,)
    yn = jnp.mean(y32 * y32, axis=1) * inv2s   # (N,)

    # Optional bf16 fast path for the MXU operands (norm / exp math stays f32).
    if matmul_dtype is not None:
        Xm, Ym = X.astype(matmul_dtype), Y.astype(matmul_dtype)
    else:
        Xm, Ym = X, Y
    Xt = Xm.T   # (D, N): one-time HBM transpose so the kernel does canonical matmuls
    Yt = Ym.T

    mm_item = jnp.dtype(Xm.dtype).itemsize
    ntot = gi * gj                  # grid points (XY term)
    nup = gi * (gi + 1) // 2        # upper-triangular grid points (XX/YY terms)
    blk2 = blk * blk

    cost = pl.CostEstimate(
        flops=2 * blk2 * D * (ntot + 2 * nup),
        transcendentals=blk2 * (ntot + 2 * nup),
        bytes_accessed=(
            2 * gi * blk * D * mm_item          # i-side X/Y blocks (re-fetched per i)
            + 2 * ntot * blk * D * mm_item      # j-side X.T/Y.T blocks (per grid step)
            + 4 * (gi + ntot) * blk * 4         # norm vectors
            + gi * 8 * 128 * 4                  # output partial slabs
        ),
    )

    # VMEM footprint: double-buffered inputs + resident output + live (blk,blk) temps.
    vmem_need = (
        2 * 2 * blk * D * mm_item     # X/Y i-row blocks
        + 2 * 2 * D * blk * mm_item   # X.T/Y.T j-col blocks
        + 2 * 4 * blk * 4             # four f32 norm blocks
        + 2 * 8 * 128 * 4             # output slab
        + 3 * blk2 * 4                # live f32 matmul/exp temporaries
    )
    vmem_limit = int(min(40 * 1024 * 1024, max(2 * vmem_need, 8 * 1024 * 1024)))

    partials = pl.pallas_call(
        functools.partial(_mmd_kernel, inv2s=inv2s, exp_dtype=exp_dtype),
        out_shape=jax.ShapeDtypeStruct((gi, 8, 128), jnp.float32),
        grid=(gi, gj),
        in_specs=[
            pl.BlockSpec((blk, D), lambda i, j: (i, 0)),   # X   row-block i
            pl.BlockSpec((D, blk), lambda i, j: (0, j)),   # X.T col-block j
            pl.BlockSpec((blk, D), lambda i, j: (i, 0)),   # Y   row-block i
            pl.BlockSpec((D, blk), lambda i, j: (0, j)),   # Y.T col-block j
            pl.BlockSpec((blk, 1), lambda i, j: (i, 0)),   # x norms, i side (pre-scaled)
            pl.BlockSpec((1, blk), lambda i, j: (0, j)),   # x norms, j side (lane-major)
            pl.BlockSpec((blk, 1), lambda i, j: (i, 0)),   # y norms, i side
            pl.BlockSpec((1, blk), lambda i, j: (0, j)),   # y norms, j side
        ],
        out_specs=pl.BlockSpec((1, 8, 128), lambda i, j: (i, 0, 0)),
        compiler_params=pltpu.CompilerParams(
            dimension_semantics=("parallel", "arbitrary"),
            vmem_limit_bytes=vmem_limit,
        ),
        cost_estimate=cost,
    )(Xm, Xt, Ym, Yt, xn[:, None], xn[None, :], yn[:, None], yn[None, :])

    # Every lane of a partial slab carries the same per-i partial sum.
    return jnp.sum(partials[:, 0, 0]) * (float(sig2) / (N * N))


def _mmd_loss_ref(X, Y, sig2=1.0):
    """Pure-JAX reference mirroring the PyTorch code path (prec -> identity)."""
    def k(a, b):
        an = jnp.mean(a * a, axis=1)
        bn = jnp.mean(b * b, axis=1)
        num = jnp.exp(a @ b.T / (2.0 * sig2))
        den = jnp.exp(an[:, None] / (2.0 * sig2)) @ jnp.exp(bn[None, :] / (2.0 * sig2))
        return num / den * sig2

    return jnp.mean(k(X, X) + k(Y, Y) - 2.0 * k(X, Y))


if __name__ == "__main__":
    key = jax.random.PRNGKey(0)
    kx, ky = jax.random.split(key)
    N, D = 256, 64  # small feature matrices; auto block=128 -> 2x2 grid (gi>=2 for v7x)
    X = jax.random.normal(kx, (N, D), dtype=jnp.float32) * 0.3
    Y = jax.random.normal(ky, (N, D), dtype=jnp.float32) * 0.3

    # f32 path (default): exercises tiled accumulation + symmetry gating.
    loss = jax.block_until_ready(mmd_loss(X, Y))
    ref = jax.block_until_ready(_mmd_loss_ref(X, Y))
    assert jnp.allclose(loss, ref, rtol=1e-4, atol=2e-5), (loss, ref)

    # bf16 MXU fast path (native bf16 inputs; norms/exp stay f32 inside the kernel).
    Xb, Yb = X.astype(jnp.bfloat16), Y.astype(jnp.bfloat16)
    loss_b = jax.block_until_ready(mmd_loss(Xb, Yb))
    ref_b = jax.block_until_ready(
        _mmd_loss_ref(Xb.astype(jnp.float32), Yb.astype(jnp.float32)))
    assert jnp.allclose(loss_b, ref_b, rtol=5e-3, atol=5e-4), (loss_b, ref_b)

    print("KERNEL_OK")
</pallas_src>

<mosaic_0001>
module attributes {stable_mosaic.version = 11 : i64} {
  func.func @_mmd_kernel(%arg0: i32, %arg1: i32, %arg2: memref<128x64xf32, #tpu.memory_space<vmem>>, %arg3: memref<64x128xf32, #tpu.memory_space<vmem>>, %arg4: memref<128x64xf32, #tpu.memory_space<vmem>>, %arg5: memref<64x128xf32, #tpu.memory_space<vmem>>, %arg6: memref<128x1xf32, #tpu.memory_space<vmem>>, %arg7: memref<1x128xf32, #tpu.memory_space<vmem>>, %arg8: memref<128x1xf32, #tpu.memory_space<vmem>>, %arg9: memref<1x128xf32, #tpu.memory_space<vmem>>, %arg10: memref<1x8x128xf32, #tpu.memory_space<vmem>>) attributes {dimension_semantics = [#tpu.dimension_semantics<parallel>, #tpu.dimension_semantics<arbitrary>], iteration_bounds = array<i64: 2, 2>, scalar_prefetch = 0 : i64, scratch_operands = 0 : i64, tpu.core_type = #tpu.core_type<tc>, window_params = [{transform_indices = @transform_0, window_bounds = array<i64: 128, 64>}, {transform_indices = @transform_1, window_bounds = array<i64: 64, 128>}, {transform_indices = @transform_2, window_bounds = array<i64: 128, 64>}, {transform_indices = @transform_3, window_bounds = array<i64: 64, 128>}, {transform_indices = @transform_4, window_bounds = array<i64: 128, 1>}, {transform_indices = @transform_5, window_bounds = array<i64: 1, 128>}, {transform_indices = @transform_6, window_bounds = array<i64: 128, 1>}, {transform_indices = @transform_7, window_bounds = array<i64: 1, 128>}, {transform_indices = @transform_8, window_bounds = array<i64: 1, 8, 128>}]} {
    %c0_i32 = arith.constant 0 : i32
    %0 = arith.cmpi eq, %arg1, %c0_i32 : i32
    %1 = arith.extui %0 : i1 to i32
    %c0_i32_0 = arith.constant 0 : i32
    %2 = arith.cmpi ne, %1, %c0_i32_0 : i32
    scf.if %2 {
      %cst_18 = arith.constant 0.000000e+00 : f32
      %27 = vector.broadcast %cst_18 : f32 to vector<1x8x128xf32>
      %c0_19 = arith.constant 0 : index
      %c0_20 = arith.constant 0 : index
      %c0_21 = arith.constant 0 : index
      %28 = vector.load %arg10[%c0_19, %c0_20, %c0_21] : memref<1x8x128xf32, #tpu.memory_space<vmem>>, vector<1x8x128xf32>
      tpu.vector_store %arg10[%c0_19, %c0_20, %c0_21], %27 {strides = array<i32>} : memref<1x8x128xf32, #tpu.memory_space<vmem>>, vector<1x8x128xf32>,
    } else {
    }
    %c0 = arith.constant 0 : index
    %c0_1 = arith.constant 0 : index
    %3 = vector.load %arg2[%c0, %c0_1] : memref<128x64xf32, #tpu.memory_space<vmem>>, vector<128x64xf32>
    %c0_2 = arith.constant 0 : index
    %c0_3 = arith.constant 0 : index
    %4 = vector.load %arg5[%c0_2, %c0_3] : memref<64x128xf32, #tpu.memory_space<vmem>>, vector<64x128xf32>
    %c0_4 = arith.constant 0 : index
    %c0_5 = arith.constant 0 : index
    %5 = vector.load %arg6[%c0_4, %c0_5] : memref<128x1xf32, #tpu.memory_space<vmem>>, vector<128x1xf32>
    %c0_6 = arith.constant 0 : index
    %c0_7 = arith.constant 0 : index
    %6 = vector.load %arg9[%c0_6, %c0_7] : memref<1x128xf32, #tpu.memory_space<vmem>>, vector<1x128xf32>
    %cst = arith.constant dense<0.000000e+00> : vector<128x128xf32>
    %7 = tpu.matmul %3, %4, %cst {dimension_numbers = #tpu.dot_dimension_numbers<[1], [0], [0], [1], [0, 0, 1, 1], [], []>} : vector<128x64xf32>, vector<64x128xf32>, vector<128x128xf32> -> vector<128x128xf32>
    %c0_8 = arith.constant 0 : index
    %c0_9 = arith.constant 0 : index
    %c0_10 = arith.constant 0 : index
    %8 = vector.load %arg10[%c0_8, %c0_9, %c0_10] : memref<1x8x128xf32, #tpu.memory_space<vmem>>, vector<1x8x128xf32>
    %cst_11 = arith.constant 5.000000e-01 : f32
    %9 = vector.broadcast %cst_11 : f32 to vector<128x128xf32>
    %10 = arith.mulf %7, %9 : vector<128x128xf32>
    %11 = vector.broadcast %5 : vector<128x1xf32> to vector<128x128xf32>
    %12 = arith.subf %10, %11 : vector<128x128xf32>
    %13 = vector.broadcast %6 : vector<1x128xf32> to vector<128x128xf32>
    %14 = arith.subf %12, %13 : vector<128x128xf32>
    %15 = math.exp %14 : vector<128x128xf32>
    %16 = vector.shape_cast %15 : vector<128x128xf32> to vector<1x128x128xf32>
    %cst_12 = arith.constant dense<0.000000e+00> : vector<1xf32>
    %17 = vector.multi_reduction <add>, %16, %cst_12 [1, 2] : vector<1x128x128xf32> to vector<1xf32>
    %18 = vector.shape_cast %17 : vector<1xf32> to vector<1x1x1xf32>
    %19 = vector.extract %18[0, 0, 0] : f32 from vector<1x1x1xf32>
    %cst_13 = arith.constant -2.000000e+00 : f32
    %20 = arith.mulf %cst_13, %19 : f32
    %21 = vector.broadcast %20 : f32 to vector<1x8x128xf32>
    %22 = arith.addf %8, %21 : vector<1x8x128xf32>
    %c0_14 = arith.constant 0 : index
    %c0_15 = arith.constant 0 : index
    %c0_16 = arith.constant 0 : index
    %23 = vector.load %arg10[%c0_14, %c0_15, %c0_16] : memref<1x8x128xf32, #tpu.memory_space<vmem>>, vector<1x8x128xf32>
    tpu.vector_store %arg10[%c0_14, %c0_15, %c0_16], %22 {strides = array<i32>} : memref<1x8x128xf32, #tpu.memory_space<vmem>>, vector<1x8x128xf32>,
    %24 = arith.cmpi sge, %arg1, %arg0 : i32
    %25 = arith.extui %24 : i1 to i32
    %c0_i32_17 = arith.constant 0 : i32
    %26 = arith.cmpi ne, %25, %c0_i32_17 : i32
    scf.if %26 {
      %c0_18 = arith.constant 0 : index
      %c0_19 = arith.constant 0 : index
      %27 = vector.load %arg3[%c0_18, %c0_19] : memref<64x128xf32, #tpu.memory_space<vmem>>, vector<64x128xf32>
      %c0_20 = arith.constant 0 : index
      %c0_21 = arith.constant 0 : index
      %28 = vector.load %arg4[%c0_20, %c0_21] : memref<128x64xf32, #tpu.memory_space<vmem>>, vector<128x64xf32>
      %c0_22 = arith.constant 0 : index
      %c0_23 = arith.constant 0 : index
      %29 = vector.load %arg7[%c0_22, %c0_23] : memref<1x128xf32, #tpu.memory_space<vmem>>, vector<1x128xf32>
      %c0_24 = arith.constant 0 : index
      %c0_25 = arith.constant 0 : index
      %30 = vector.load %arg8[%c0_24, %c0_25] : memref<128x1xf32, #tpu.memory_space<vmem>>, vector<128x1xf32>
      %cst_26 = arith.constant dense<0.000000e+00> : vector<128x128xf32>
      %31 = tpu.matmul %3, %27, %cst_26 {dimension_numbers = #tpu.dot_dimension_numbers<[1], [0], [0], [1], [0, 0, 1, 1], [], []>} : vector<128x64xf32>, vector<64x128xf32>, vector<128x128xf32> -> vector<128x128xf32>
      %cst_27 = arith.constant 5.000000e-01 : f32
      %32 = vector.broadcast %cst_27 : f32 to vector<128x128xf32>
      %33 = arith.mulf %31, %32 : vector<128x128xf32>
      %34 = vector.broadcast %5 : vector<128x1xf32> to vector<128x128xf32>
      %35 = arith.subf %33, %34 : vector<128x128xf32>
      %36 = vector.broadcast %29 : vector<1x128xf32> to vector<128x128xf32>
      %37 = arith.subf %35, %36 : vector<128x128xf32>
      %38 = math.exp %37 : vector<128x128xf32>
      %cst_28 = arith.constant dense<0.000000e+00> : vector<128x128xf32>
      %39 = tpu.matmul %28, %4, %cst_28 {dimension_numbers = #tpu.dot_dimension_numbers<[1], [0], [0], [1], [0, 0, 1, 1], [], []>} : vector<128x64xf32>, vector<64x128xf32>, vector<128x128xf32> -> vector<128x128xf32>
      %cst_29 = arith.constant 5.000000e-01 : f32
      %40 = vector.broadcast %cst_29 : f32 to vector<128x128xf32>
      %41 = arith.mulf %39, %40 : vector<128x128xf32>
      %42 = vector.broadcast %30 : vector<128x1xf32> to vector<128x128xf32>
      %43 = arith.subf %41, %42 : vector<128x128xf32>
      %44 = vector.broadcast %6 : vector<1x128xf32> to vector<128x128xf32>
      %45 = arith.subf %43, %44 : vector<128x128xf32>
      %46 = math.exp %45 : vector<128x128xf32>
      %47 = arith.cmpi eq, %arg0, %arg1 : i32
      %cst_30 = arith.constant 1.000000e+00 : f32
      %cst_31 = arith.constant 2.000000e+00 : f32
      %48 = arith.select %47, %cst_30, %cst_31 : f32
      %c0_32 = arith.constant 0 : index
      %c0_33 = arith.constant 0 : index
      %c0_34 = arith.constant 0 : index
      %49 = vector.load %arg10[%c0_32, %c0_33, %c0_34] : memref<1x8x128xf32, #tpu.memory_space<vmem>>, vector<1x8x128xf32>
      %50 = arith.addf %38, %46 : vector<128x128xf32>
      %51 = vector.shape_cast %50 : vector<128x128xf32> to vector<1x128x128xf32>
      %cst_35 = arith.constant dense<0.000000e+00> : vector<1xf32>
      %52 = vector.multi_reduction <add>, %51, %cst_35 [1, 2] : vector<1x128x128xf32> to vector<1xf32>
      %53 = vector.shape_cast %52 : vector<1xf32> to vector<1x1x1xf32>
      %54 = vector.extract %53[0, 0, 0] : f32 from vector<1x1x1xf32>
      %55 = arith.mulf %48, %54 : f32
      %56 = vector.broadcast %55 : f32 to vector<1x8x128xf32>
      %57 = arith.addf %49, %56 : vector<1x8x128xf32>
      %c0_36 = arith.constant 0 : index
      %c0_37 = arith.constant 0 : index
      %c0_38 = arith.constant 0 : index
      %58 = vector.load %arg10[%c0_36, %c0_37, %c0_38] : memref<1x8x128xf32, #tpu.memory_space<vmem>>, vector<1x8x128xf32>
      tpu.vector_store %arg10[%c0_36, %c0_37, %c0_38], %57 {strides = array<i32>} : memref<1x8x128xf32, #tpu.memory_space<vmem>>, vector<1x8x128xf32>,
    } else {
    }
    return
  }
  func.func @transform_0(%arg0: i32, %arg1: i32) -> (i32, i32) {
    %c0_i32 = arith.constant 0 : i32
    %c0_i32_0 = arith.constant 0 : i32
    return %arg0, %c0_i32 : i32, i32
  }
  func.func @transform_1(%arg0: i32, %arg1: i32) -> (i32, i32) {
    %c0_i32 = arith.constant 0 : i32
    %c0_i32_0 = arith.constant 0 : i32
    return %c0_i32, %arg1 : i32, i32
  }
  func.func @transform_2(%arg0: i32, %arg1: i32) -> (i32, i32) {
    %c0_i32 = arith.constant 0 : i32
    %c0_i32_0 = arith.constant 0 : i32
    return %arg0, %c0_i32 : i32, i32
  }
  func.func @transform_3(%arg0: i32, %arg1: i32) -> (i32, i32) {
    %c0_i32 = arith.constant 0 : i32
    %c0_i32_0 = arith.constant 0 : i32
    return %c0_i32, %arg1 : i32, i32
  }
  func.func @transform_4(%arg0: i32, %arg1: i32) -> (i32, i32) {
    %c0_i32 = arith.constant 0 : i32
    %c0_i32_0 = arith.constant 0 : i32
    return %arg0, %c0_i32 : i32, i32
  }
  func.func @transform_5(%arg0: i32, %arg1: i32) -> (i32, i32) {
    %c0_i32 = arith.constant 0 : i32
    %c0_i32_0 = arith.constant 0 : i32
    return %c0_i32, %arg1 : i32, i32
  }
  func.func @transform_6(%arg0: i32, %arg1: i32) -> (i32, i32) {
    %c0_i32 = arith.constant 0 : i32
    %c0_i32_0 = arith.constant 0 : i32
    return %arg0, %c0_i32 : i32, i32
  }
  func.func @transform_7(%arg0: i32, %arg1: i32) -> (i32, i32) {
    %c0_i32 = arith.constant 0 : i32
    %c0_i32_0 = arith.constant 0 : i32
    return %c0_i32, %arg1 : i32, i32
  }
  func.func @transform_8(%arg0: i32, %arg1: i32) -> (i32, i32, i32) {
    %c0_i32 = arith.constant 0 : i32
    %c0_i32_0 = arith.constant 0 : i32
    %c0_i32_1 = arith.constant 0 : i32
    return %arg0, %c0_i32, %c0_i32_0 : i32, i32, i32
  }
}

</mosaic_0001>

<llo_original>
// kernel: tpu_custom_call.1
$region0: #{tpu_custom_call.1}
  #allocation0 [shape = 'u32[]', space=smem, size = 0x4, offset = 0x4, fixed_abs, tag = 'smem constant byte address 0x4 - core index']
  #allocation1 [shape = 'u32[144,128]{1,0:T(1,128)}', space=vmem, size = 0x12000, scoped, tag = 'internal scratch']
  %s0 = inlined_call_operand.vmem [shape: f32[256,64], index: 0, kind: input, shape index: {}]
  %s1 = inlined_call_operand.vmem [shape: f32[64,256], index: 1, kind: input, shape index: {}]
  %s2 = inlined_call_operand.vmem [shape: f32[256,64], index: 2, kind: input, shape index: {}]
  %s3 = inlined_call_operand.vmem [shape: f32[64,256], index: 3, kind: input, shape index: {}]
  %s4 = inlined_call_operand.vmem [shape: f32[256,1], index: 4, kind: input, shape index: {}]
  %s5 = inlined_call_operand.vmem [shape: f32[1,256], index: 5, kind: input, shape index: {}]
  %s6 = inlined_call_operand.vmem [shape: f32[256,1], index: 6, kind: input, shape index: {}]
  %s7 = inlined_call_operand.vmem [shape: f32[1,256], index: 7, kind: input, shape index: {}]
  %s8 = inlined_call_operand.hbm [shape: f32[2,8,128], index: 8, kind: output, shape index: {}]
  %s9 = sld [smem:[#allocation0]]
  $region149: #{tpu_custom_call.1} parent=0
    _
  %s11 = ssub.s32 1, %s9
  %s12 = scalar_select 0, %s11, %s9
  $region1: #{tpu_custom_call.1} parent=0
    #allocation2 [shape = 'u8[65536]{0}', space=vmem, size = 0x10000, scoped, tag = 'input window, operand 1']
    #allocation3 [shape = 'u8[65536]{0}', space=vmem, size = 0x10000, scoped, tag = 'input window, operand 3']
    #allocation4 [shape = 'u8[8192]{0}', space=vmem, size = 0x2000, scoped, tag = 'output window, operand 0']
    #allocation5 [shape = 's32[2]{0}', space=sflag, size = 0x8, scoped, tag = 'scoped memory for tpu_custom_call.1']
    %13 = vsyncpa [#allocation5], 0
    %s14 = scalar_lea.sflag [#allocation5], 1
    %15 = vsyncpa %s14, 0
    loop: start=0, step=1, limit=6
    $region2: #{tpu_custom_call.1} parent=1 // loop_pre_header
      _
    $region3: #{tpu_custom_call.1} parent=1 // loop_header
      %s17 = sphi 0, %s21
      %p18 = scmp.ge.s32.totalorder %s17, 6
      %s24 = sphi 0, %s36
      %s25 = sphi 0, %s32
      %s26 = sphi 0, %s24
      %s27 = sphi 0, %s25
      %s28 = sphi 0, %s26
      %s29 = sphi 0, %s27
      %s39 = sphi 0, %s41
      %s42 = sphi 0, %s39
      %s43 = sphi 0, %s42
      %s59 = sphi 0, %s43
      %s65 = sphi 0, %s67
      %s68 = sphi 0, %s65
      %s69 = sphi 0, %s68
      %s85 = sphi 0, %s69
      %s91 = sphi 0, %s93
      %s94 = sphi 0, %s91
      %s95 = sphi 0, %s94
      %s111 = sphi 0, %s95
      %s117 = sphi 0, %s119
      %s120 = sphi 0, %s117
      %s121 = sphi 0, %s120
      %s137 = sphi 0, %s121
      %s143 = sphi 0, %s145
      %s146 = sphi 0, %s143
      %s147 = sphi 0, %s146
      %s163 = sphi 0, %s147
      %s169 = sphi 0, %s171
      %s172 = sphi 0, %s169
      %s173 = sphi 0, %s172
      %s189 = sphi 0, %s173
      %s195 = sphi 0, %s197
      %s198 = sphi 0, %s195
      %s199 = sphi 0, %s198
      %s215 = sphi 0, %s199
      %s221 = sphi 0, %s223
      %s224 = sphi 0, %s221
      %s225 = sphi 0, %s224
      %s241 = sphi 0, %s225
      %s247 = sphi 0, %s249
      %s250 = sphi 0, %s247
      %s251 = sphi 0, %s250
      %s267 = sphi 0, %s251
    $region4: #{tpu_custom_call.1} parent=1 // loop_header_branch
      %20 = sbr.rel (%p18) target = $region8
    $region5: #{tpu_custom_call.1} parent=1 // loop_body
      %s22 = ssub.s32 %s17, 1
      %s23 = ssub.s32 %s17, 2
      %s30 = sadd.s32 1, %s25
      %p31 = scmp.ge.s32.totalorder %s30, 2
      %s32 = scalar_select %p31, 0, %s30
      %s33 = sadd.s32 1, %s24
      %s34 = scalar_select %p31, %s33, %s24
      %p35 = scmp.ge.s32.totalorder %s34, 2
      %s36 = scalar_select %p35, 0, %s34
      %s37 = ssub.s32 %s24, %s36
      %p38 = scmp.eq.s32.totalorder %s37, 0
      %s40 = sadd.s32 %s39, 1
      %s41 = scalar_select %p38, %s39, %s40
      %p44 = pneg %p38
      %p45 = scmp.eq.s32.totalorder %s17, 3
      %p46 = por %p44, %p45
      %p47 = scmp.ne.s32.totalorder %s39, %s42
      %p48 = scmp.eq.s32.totalorder %s17, 0
      %p49 = por %p47, %p48
      %p50 = scmp.ne.s32.totalorder %s39, %s42
      %p51 = scmp.eq.s32.totalorder %s22, 3
      %p52 = por %p50, %p51
      %p53 = scmp.ne.s32.totalorder %s42, %s43
      %p54 = scmp.eq.s32.totalorder %s22, 0
      %p55 = por %p53, %p54
      %p56 = scmp.ne.s32.totalorder %s42, %s43
      %p57 = scmp.eq.s32.totalorder %s23, 3
      %p58 = por %p56, %p57
      %p60 = scmp.ne.s32.totalorder %s43, %s59
      %p61 = scmp.eq.s32.totalorder %s23, 0
      %p62 = por %p60, %p61
      %s63 = ssub.s32 %s25, %s32
      %p64 = scmp.eq.s32.totalorder %s63, 0
      %s66 = sadd.s32 %s65, 1
      %s67 = scalar_select %p64, %s65, %s66
      %p70 = pneg %p64
      %p71 = scmp.eq.s32.totalorder %s17, 3
      %p72 = por %p70, %p71
      %p73 = scmp.ne.s32.totalorder %s65, %s68
      %p74 = scmp.eq.s32.totalorder %s17, 0
      %p75 = por %p73, %p74
      %p76 = scmp.ne.s32.totalorder %s65, %s68
      %p77 = scmp.eq.s32.totalorder %s22, 3
      %p78 = por %p76, %p77
      %p79 = scmp.ne.s32.totalorder %s68, %s69
      %p80 = scmp.eq.s32.totalorder %s22, 0
      %p81 = por %p79, %p80
      %p82 = scmp.ne.s32.totalorder %s68, %s69
      %p83 = scmp.eq.s32.totalorder %s23, 3
      %p84 = por %p82, %p83
      %p86 = scmp.ne.s32.totalorder %s69, %s85
      %p87 = scmp.eq.s32.totalorder %s23, 0
      %p88 = por %p86, %p87
      %s89 = ssub.s32 %s24, %s36
      %p90 = scmp.eq.s32.totalorder %s89, 0
      %s92 = sadd.s32 %s91, 1
      %s93 = scalar_select %p90, %s91, %s92
      %p96 = pneg %p90
      %p97 = scmp.eq.s32.totalorder %s17, 3
      %p98 = por %p96, %p97
      %p99 = scmp.ne.s32.totalorder %s91, %s94
      %p100 = scmp.eq.s32.totalorder %s17, 0
      %p101 = por %p99, %p100
      %p102 = scmp.ne.s32.totalorder %s91, %s94
      %p103 = scmp.eq.s32.totalorder %s22, 3
      %p104 = por %p102, %p103
      %p105 = scmp.ne.s32.totalorder %s94, %s95
      %p106 = scmp.eq.s32.totalorder %s22, 0
      %p107 = por %p105, %p106
      %p108 = scmp.ne.s32.totalorder %s94, %s95
      %p109 = scmp.eq.s32.totalorder %s23, 3
      %p110 = por %p108, %p109
      %p112 = scmp.ne.s32.totalorder %s95, %s111
      %p113 = scmp.eq.s32.totalorder %s23, 0
      %p114 = por %p112, %p113
      %s115 = ssub.s32 %s25, %s32
      %p116 = scmp.eq.s32.totalorder %s115, 0
      %s118 = sadd.s32 %s117, 1
      %s119 = scalar_select %p116, %s117, %s118
      %p122 = pneg %p116
      %p123 = scmp.eq.s32.totalorder %s17, 3
      %p124 = por %p122, %p123
      %p125 = scmp.ne.s32.totalorder %s117, %s120
      %p126 = scmp.eq.s32.totalorder %s17, 0
      %p127 = por %p125, %p126
      %p128 = scmp.ne.s32.totalorder %s117, %s120
      %p129 = scmp.eq.s32.totalorder %s22, 3
      %p130 = por %p128, %p129
      %p131 = scmp.ne.s32.totalorder %s120, %s121
      %p132 = scmp.eq.s32.totalorder %s22, 0
      %p133 = por %p131, %p132
      %p134 = scmp.ne.s32.totalorder %s120, %s121
      %p135 = scmp.eq.s32.totalorder %s23, 3
      %p136 = por %p134, %p135
      %p138 = scmp.ne.s32.totalorder %s121, %s137
      %p139 = scmp.eq.s32.totalorder %s23, 0
      %p140 = por %p138, %p139
      %s141 = ssub.s32 %s24, %s36
      %p142 = scmp.eq.s32.totalorder %s141, 0
      %s144 = sadd.s32 %s143, 1
      %s145 = scalar_select %p142, %s143, %s144
      %p148 = pneg %p142
      %p149 = scmp.eq.s32.totalorder %s17, 3
      %p150 = por %p148, %p149
      %p151 = scmp.ne.s32.totalorder %s143, %s146
      %p152 = scmp.eq.s32.totalorder %s17, 0
      %p153 = por %p151, %p152
      %p154 = scmp.ne.s32.totalorder %s143, %s146
      %p155 = scmp.eq.s32.totalorder %s22, 3
      %p156 = por %p154, %p155
      %p157 = scmp.ne.s32.totalorder %s146, %s147
      %p158 = scmp.eq.s32.totalorder %s22, 0
      %p159 = por %p157, %p158
      %p160 = scmp.ne.s32.totalorder %s146, %s147
      %p161 = scmp.eq.s32.totalorder %s23, 3
      %p162 = por %p160, %p161
      %p164 = scmp.ne.s32.totalorder %s147, %s163
      %p165 = scmp.eq.s32.totalorder %s23, 0
      %p166 = por %p164, %p165
      %s167 = ssub.s32 %s25, %s32
      %p168 = scmp.eq.s32.totalorder %s167, 0
      %s170 = sadd.s32 %s169, 1
      %s171 = scalar_select %p168, %s169, %s170
      %p174 = pneg %p168
      %p175 = scmp.eq.s32.totalorder %s17, 3
      %p176 = por %p174, %p175
      %p177 = scmp.ne.s32.totalorder %s169, %s172
      %p178 = scmp.eq.s32.totalorder %s17, 0
      %p179 = por %p177, %p178
      %p180 = scmp.ne.s32.totalorder %s169, %s172
      %p181 = scmp.eq.s32.totalorder %s22, 3
      %p182 = por %p180, %p181
      %p183 = scmp.ne.s32.totalorder %s172, %s173
      %p184 = scmp.eq.s32.totalorder %s22, 0
      %p185 = por %p183, %p184
      %p186 = scmp.ne.s32.totalorder %s172, %s173
      %p187 = scmp.eq.s32.totalorder %s23, 3
      %p188 = por %p186, %p187
      %p190 = scmp.ne.s32.totalorder %s173, %s189
      %p191 = scmp.eq.s32.totalorder %s23, 0
      %p192 = por %p190, %p191
      %s193 = ssub.s32 %s24, %s36
      %p194 = scmp.eq.s32.totalorder %s193, 0
      %s196 = sadd.s32 %s195, 1
      %s197 = scalar_select %p194, %s195, %s196
      %p200 = pneg %p194
      %p201 = scmp.eq.s32.totalorder %s17, 3
      %p202 = por %p200, %p201
      %p203 = scmp.ne.s32.totalorder %s195, %s198
      %p204 = scmp.eq.s32.totalorder %s17, 0
      %p205 = por %p203, %p204
      %p206 = scmp.ne.s32.totalorder %s195, %s198
      %p207 = scmp.eq.s32.totalorder %s22, 3
      %p208 = por %p206, %p207
      %p209 = scmp.ne.s32.totalorder %s198, %s199
      %p210 = scmp.eq.s32.totalorder %s22, 0
      %p211 = por %p209, %p210
      %p212 = scmp.ne.s32.totalorder %s198, %s199
      %p213 = scmp.eq.s32.totalorder %s23, 3
      %p214 = por %p212, %p213
      %p216 = scmp.ne.s32.totalorder %s199, %s215
      %p217 = scmp.eq.s32.totalorder %s23, 0
      %p218 = por %p216, %p217
      %s219 = ssub.s32 %s25, %s32
      %p220 = scmp.eq.s32.totalorder %s219, 0
      %s222 = sadd.s32 %s221, 1
      %s223 = scalar_select %p220, %s221, %s222
      %p226 = pneg %p220
      %p227 = scmp.eq.s32.totalorder %s17, 3
      %p228 = por %p226, %p227
      %p229 = scmp.ne.s32.totalorder %s221, %s224
      %p230 = scmp.eq.s32.totalorder %s17, 0
      %p231 = por %p229, %p230
      %p232 = scmp.ne.s32.totalorder %s221, %s224
      %p233 = scmp.eq.s32.totalorder %s22, 3
      %p234 = por %p232, %p233
      %p235 = scmp.ne.s32.totalorder %s224, %s225
      %p236 = scmp.eq.s32.totalorder %s22, 0
      %p237 = por %p235, %p236
      %p238 = scmp.ne.s32.totalorder %s224, %s225
      %p239 = scmp.eq.s32.totalorder %s23, 3
      %p240 = por %p238, %p239
      %p242 = scmp.ne.s32.totalorder %s225, %s241
      %p243 = scmp.eq.s32.totalorder %s23, 0
      %p244 = por %p242, %p243
      %s245 = ssub.s32 %s24, %s36
      %p246 = scmp.eq.s32.totalorder %s245, 0
      %s248 = sadd.s32 %s247, 1
      %s249 = scalar_select %p246, %s247, %s248
      %p252 = pneg %p246
      %p253 = scmp.eq.s32.totalorder %s17, 3
      %p254 = por %p252, %p253
      %p255 = scmp.ne.s32.totalorder %s247, %s250
      %p256 = scmp.eq.s32.totalorder %s17, 0
      %p257 = por %p255, %p256
      %p258 = scmp.ne.s32.totalorder %s247, %s250
      %p259 = scmp.eq.s32.totalorder %s22, 3
      %p260 = por %p258, %p259
      %p261 = scmp.ne.s32.totalorder %s250, %s251
      %p262 = scmp.eq.s32.totalorder %s22, 0
      %p263 = por %p261, %p262
      %p264 = scmp.ne.s32.totalorder %s250, %s251
      %p265 = scmp.eq.s32.totalorder %s23, 3
      %p266 = por %p264, %p265
      %p268 = scmp.ne.s32.totalorder %s251, %s267
      %p269 = scmp.eq.s32.totalorder %s23, 0
      %p270 = por %p268, %p269
      %p271 = scmp.le.s32.totalorder 1, %s17
      %p272 = scmp.lt.s32.totalorder %s17, 5
      %p273 = pnand %p271, %p272
      %p274 = pneg %p273
      // Predicated region
      $region9: #{tpu_custom_call.1} parent=5 // pred_check
        _
      $region10: #{tpu_custom_call.1} parent=5 // pred_check_branch
        %276 = sbr.rel (%p273) target = $region12
      $region11: #{tpu_custom_call.1} parent=5 // pred_region
        %s277 = ssub.s32 %s17, 1
      $region12: #{tpu_custom_call.1} parent=5 // pred_fallthru
        _
      %p278 = scmp.lt.s32.totalorder %s17, 4
      // Predicated region
      $region13: #{tpu_custom_call.1} parent=5 // pred_check
        %p279 = pneg %p278
      $region14: #{tpu_custom_call.1} parent=5 // pred_check_branch
        %281 = sbr.rel (%p279) target = $region16
      $region15: #{tpu_custom_call.1} parent=5 // pred_region
        // Predicated region
        $region17: #{tpu_custom_call.1} parent=15 // pred_check
          %p282 = pneg %p49
        $region18: #{tpu_custom_call.1} parent=15 // pred_check_branch
          %284 = sbr.rel (%p282) target = $region20
        $region19: #{tpu_custom_call.1} parent=15 // pred_region
          %s285 = smul.u32 16, %s24
          %p286 = scmp.lt.s32.totalorder %s285, 31
          %s287 = scalar_select %p286, %s285, 31
          %s288 = smul.addr %s287, 8
          %s289 = scalar_lea.vmem %s0, %s288
          %s290 = smul.u32 16, %s24
        $region20: #{tpu_custom_call.1} parent=15 // pred_fallthru
          _
        // Predicated region
        $region21: #{tpu_custom_call.1} parent=15 // pred_check
          %p291 = pneg %p75
        $region22: #{tpu_custom_call.1} parent=15 // pred_check_branch
          %293 = sbr.rel (%p291) target = $region24
        $region23: #{tpu_custom_call.1} parent=15 // pred_region
          %s294 = sand.u32 %s65, 1
          %s295 = sand.u32 %s65, 1
          %s296 = smul.addr %s295, 64
          %s297 = scalar_lea.vmem [#allocation2], %s296
          %s298 = smul.addr %s25, 8
          %s299 = scalar_lea.vmem %s1, %s298
          // Predicated region
          $region25: #{tpu_custom_call.1} parent=23 // pred_check
            _
          $region26: #{tpu_custom_call.1} parent=23 // pred_check_branch
            %301 = sbr.rel (0) target = $region28
          $region27: #{tpu_custom_call.1} parent=23 // pred_region
            // Predicated region
            $region29: #{tpu_custom_call.1} parent=27 // pred_check
              _
            $region30: #{tpu_custom_call.1} parent=27 // pred_check_branch
              %303 = sbr.rel (0) target = $region32
            $region31: #{tpu_custom_call.1} parent=27 // pred_region
              // Predicated region
              $region44: #{tpu_custom_call.1} parent=31 // pred_check
                _
              $region45: #{tpu_custom_call.1} parent=31 // pred_check_branch
                %332 = sbr.rel (0) target = $region47
              $region46: #{tpu_custom_call.1} parent=31 // pred_region
                loop: start=0, step=1, limit=1
                $region48: #{tpu_custom_call.1} parent=46 // loop_pre_header
                  _
                $region49: #{tpu_custom_call.1} parent=46 // loop_header
                  %s334 = sphi 0, %s338
                  %p335 = scmp.ge.s32.totalorder %s334, 1
                  %s339 = sphi %s299, %s299
                  %s340 = sphi %s297, %s297
                $region50: #{tpu_custom_call.1} parent=46 // loop_header_branch
                  %337 = sbr.rel (%p335) target = $region54
                $region51: #{tpu_custom_call.1} parent=46 // loop_body
                  %v341 = vld [vmem:[%s339] sm:$0xff]
                  %342 = vst [vmem:[%s340] sm:$0xff] %v341
                  %v343 = vld [vmem:[%s339 + $0x10] sm:$0xff]
                  %344 = vst [vmem:[%s340 + $0x8] sm:$0xff] %v343
                  %v345 = vld [vmem:[%s339 + $0x20] sm:$0xff]
                  %346 = vst [vmem:[%s340 + $0x10] sm:$0xff] %v345
                  %v347 = vld [vmem:[%s339 + $0x30] sm:$0xff]
                  %348 = vst [vmem:[%s340 + $0x18] sm:$0xff] %v347
                  %v349 = vld [vmem:[%s339 + $0x40] sm:$0xff]
                  %350 = vst [vmem:[%s340 + $0x20] sm:$0xff] %v349
                  %v351 = vld [vmem:[%s339 + $0x50] sm:$0xff]
                  %352 = vst [vmem:[%s340 + $0x28] sm:$0xff] %v351
                  %v353 = vld [vmem:[%s339 + $0x60] sm:$0xff]
                  %354 = vst [vmem:[%s340 + $0x30] sm:$0xff] %v353
                  %v355 = vld [vmem:[%s339 + $0x70] sm:$0xff]
                  %356 = vst [vmem:[%s340 + $0x38] sm:$0xff] %v355
                $region52: #{tpu_custom_call.1} parent=46 // loop_footer
                  %s338 = sadd.s32 1, %s334
                $region53: #{tpu_custom_call.1} parent=46 // loop_footer_branch
                  %333 = sbr.rel target = $region49
                $region54: #{tpu_custom_call.1} parent=46 // loop_exit
                  _
              $region47: #{tpu_custom_call.1} parent=31 // pred_fallthru
                _
              // Predicated region
              $region55: #{tpu_custom_call.1} parent=31 // pred_check
                _
              $region56: #{tpu_custom_call.1} parent=31 // pred_check_branch
                %358 = sbr.rel target = $region58
              $region57: #{tpu_custom_call.1} parent=31 // pred_region
                _
              $region58: #{tpu_custom_call.1} parent=31 // pred_fallthru
                _
            $region32: #{tpu_custom_call.1} parent=27 // pred_fallthru
              _
            // Predicated region
            $region33: #{tpu_custom_call.1} parent=27 // pred_check
              _
            $region34: #{tpu_custom_call.1} parent=27 // pred_check_branch
              %305 = sbr.rel target = $region36
            $region35: #{tpu_custom_call.1} parent=27 // pred_region
              loop: start=0, step=1, limit=1
              $region37: #{tpu_custom_call.1} parent=35 // loop_pre_header
                _
              $region38: #{tpu_custom_call.1} parent=35 // loop_header
                %s308 = sphi 0, %s312
                %p309 = scmp.ge.s32.totalorder %s308, 1
                %s313 = sphi %s299, %s299
                %s314 = sphi %s297, %s297
              $region39: #{tpu_custom_call.1} parent=35 // loop_header_branch
                %311 = sbr.rel (%p309) target = $region43
              $region40: #{tpu_custom_call.1} parent=35 // loop_body
                %v315 = vld [vmem:[%s313] sm:$0xff]
                %316 = vst [vmem:[%s314] sm:$0xff] %v315
                %v317 = vld [vmem:[%s313 + $0x10] sm:$0xff]
                %318 = vst [vmem:[%s314 + $0x8] sm:$0xff] %v317
                %v319 = vld [vmem:[%s313 + $0x20] sm:$0xff]
                %320 = vst [vmem:[%s314 + $0x10] sm:$0xff] %v319
                %v321 = vld [vmem:[%s313 + $0x30] sm:$0xff]
                %322 = vst [vmem:[%s314 + $0x18] sm:$0xff] %v321
                %v323 = vld [vmem:[%s313 + $0x40] sm:$0xff]
                %324 = vst [vmem:[%s314 + $0x20] sm:$0xff] %v323
                %v325 = vld [vmem:[%s313 + $0x50] sm:$0xff]
                %326 = vst [vmem:[%s314 + $0x28] sm:$0xff] %v325
                %v327 = vld [vmem:[%s313 + $0x60] sm:$0xff]
                %328 = vst [vmem:[%s314 + $0x30] sm:$0xff] %v327
                %v329 = vld [vmem:[%s313 + $0x70] sm:$0xff]
                %330 = vst [vmem:[%s314 + $0x38] sm:$0xff] %v329
              $region41: #{tpu_custom_call.1} parent=35 // loop_footer
                %s312 = sadd.s32 1, %s308
              $region42: #{tpu_custom_call.1} parent=35 // loop_footer_branch
                %307 = sbr.rel target = $region38
              $region43: #{tpu_custom_call.1} parent=35 // loop_exit
                _
            $region36: #{tpu_custom_call.1} parent=27 // pred_fallthru
              _
          $region28: #{tpu_custom_call.1} parent=23 // pred_fallthru
            _
          %359 = vnop
        $region24: #{tpu_custom_call.1} parent=15 // pred_fallthru
          _
        // Predicated region
        $region59: #{tpu_custom_call.1} parent=15 // pred_check
          %p360 = pneg %p101
        $region60: #{tpu_custom_call.1} parent=15 // pred_check_branch
          %362 = sbr.rel (%p360) target = $region62
        $region61: #{tpu_custom_call.1} parent=15 // pred_region
          %s363 = smul.u32 16, %s24
          %p364 = scmp.lt.s32.totalorder %s363, 31
          %s365 = scalar_select %p364, %s363, 31
          %s366 = smul.addr %s365, 8
          %s367 = scalar_lea.vmem %s2, %s366
          %s368 = smul.u32 16, %s24
        $region62: #{tpu_custom_call.1} parent=15 // pred_fallthru
          _
        // Predicated region
        $region63: #{tpu_custom_call.1} parent=15 // pred_check
          %p369 = pneg %p127
        $region64: #{tpu_custom_call.1} parent=15 // pred_check_branch
          %371 = sbr.rel (%p369) target = $region66
        $region65: #{tpu_custom_call.1} parent=15 // pred_region
          %s372 = sand.u32 %s117, 1
          %s373 = sand.u32 %s117, 1
          %s374 = smul.addr %s373, 64
          %s375 = scalar_lea.vmem [#allocation3], %s374
          %s376 = smul.addr %s25, 8
          %s377 = scalar_lea.vmem %s3, %s376
          // Predicated region
          $region67: #{tpu_custom_call.1} parent=65 // pred_check
            _
          $region68: #{tpu_custom_call.1} parent=65 // pred_check_branch
            %379 = sbr.rel (0) target = $region70
          $region69: #{tpu_custom_call.1} parent=65 // pred_region
            // Predicated region
            $region71: #{tpu_custom_call.1} parent=69 // pred_check
              _
            $region72: #{tpu_custom_call.1} parent=69 // pred_check_branch
              %381 = sbr.rel (0) target = $region74
            $region73: #{tpu_custom_call.1} parent=69 // pred_region
              // Predicated region
              $region86: #{tpu_custom_call.1} parent=73 // pred_check
                _
              $region87: #{tpu_custom_call.1} parent=73 // pred_check_branch
                %410 = sbr.rel (0) target = $region89
              $region88: #{tpu_custom_call.1} parent=73 // pred_region
                loop: start=0, step=1, limit=1
                $region90: #{tpu_custom_call.1} parent=88 // loop_pre_header
                  _
                $region91: #{tpu_custom_call.1} parent=88 // loop_header
                  %s412 = sphi 0, %s416
                  %p413 = scmp.ge.s32.totalorder %s412, 1
                  %s417 = sphi %s377, %s377
                  %s418 = sphi %s375, %s375
                $region92: #{tpu_custom_call.1} parent=88 // loop_header_branch
                  %415 = sbr.rel (%p413) target = $region96
                $region93: #{tpu_custom_call.1} parent=88 // loop_body
                  %v419 = vld [vmem:[%s417] sm:$0xff]
                  %420 = vst [vmem:[%s418] sm:$0xff] %v419
                  %v421 = vld [vmem:[%s417 + $0x10] sm:$0xff]
                  %422 = vst [vmem:[%s418 + $0x8] sm:$0xff] %v421
                  %v423 = vld [vmem:[%s417 + $0x20] sm:$0xff]
                  %424 = vst [vmem:[%s418 + $0x10] sm:$0xff] %v423
                  %v425 = vld [vmem:[%s417 + $0x30] sm:$0xff]
                  %426 = vst [vmem:[%s418 + $0x18] sm:$0xff] %v425
                  %v427 = vld [vmem:[%s417 + $0x40] sm:$0xff]
                  %428 = vst [vmem:[%s418 + $0x20] sm:$0xff] %v427
                  %v429 = vld [vmem:[%s417 + $0x50] sm:$0xff]
                  %430 = vst [vmem:[%s418 + $0x28] sm:$0xff] %v429
                  %v431 = vld [vmem:[%s417 + $0x60] sm:$0xff]
                  %432 = vst [vmem:[%s418 + $0x30] sm:$0xff] %v431
                  %v433 = vld [vmem:[%s417 + $0x70] sm:$0xff]
                  %434 = vst [vmem:[%s418 + $0x38] sm:$0xff] %v433
                $region94: #{tpu_custom_call.1} parent=88 // loop_footer
                  %s416 = sadd.s32 1, %s412
                $region95: #{tpu_custom_call.1} parent=88 // loop_footer_branch
                  %411 = sbr.rel target = $region91
                $region96: #{tpu_custom_call.1} parent=88 // loop_exit
                  _
              $region89: #{tpu_custom_call.1} parent=73 // pred_fallthru
                _
              // Predicated region
              $region97: #{tpu_custom_call.1} parent=73 // pred_check
                _
              $region98: #{tpu_custom_call.1} parent=73 // pred_check_branch
                %436 = sbr.rel target = $region100
              $region99: #{tpu_custom_call.1} parent=73 // pred_region
                _
              $region100: #{tpu_custom_call.1} parent=73 // pred_fallthru
                _
            $region74: #{tpu_custom_call.1} parent=69 // pred_fallthru
              _
            // Predicated region
            $region75: #{tpu_custom_call.1} parent=69 // pred_check
              _
            $region76: #{tpu_custom_call.1} parent=69 // pred_check_branch
              %383 = sbr.rel target = $region78
            $region77: #{tpu_custom_call.1} parent=69 // pred_region
              loop: start=0, step=1, limit=1
              $region79: #{tpu_custom_call.1} parent=77 // loop_pre_header
                _
              $region80: #{tpu_custom_call.1} parent=77 // loop_header
                %s386 = sphi 0, %s390
                %p387 = scmp.ge.s32.totalorder %s386, 1
                %s391 = sphi %s377, %s377
                %s392 = sphi %s375, %s375
              $region81: #{tpu_custom_call.1} parent=77 // loop_header_branch
                %389 = sbr.rel (%p387) target = $region85
              $region82: #{tpu_custom_call.1} parent=77 // loop_body
                %v393 = vld [vmem:[%s391] sm:$0xff]
                %394 = vst [vmem:[%s392] sm:$0xff] %v393
                %v395 = vld [vmem:[%s391 + $0x10] sm:$0xff]
                %396 = vst [vmem:[%s392 + $0x8] sm:$0xff] %v395
                %v397 = vld [vmem:[%s391 + $0x20] sm:$0xff]
                %398 = vst [vmem:[%s392 + $0x10] sm:$0xff] %v397
                %v399 = vld [vmem:[%s391 + $0x30] sm:$0xff]
                %400 = vst [vmem:[%s392 + $0x18] sm:$0xff] %v399
                %v401 = vld [vmem:[%s391 + $0x40] sm:$0xff]
                %402 = vst [vmem:[%s392 + $0x20] sm:$0xff] %v401
                %v403 = vld [vmem:[%s391 + $0x50] sm:$0xff]
                %404 = vst [vmem:[%s392 + $0x28] sm:$0xff] %v403
                %v405 = vld [vmem:[%s391 + $0x60] sm:$0xff]
                %406 = vst [vmem:[%s392 + $0x30] sm:$0xff] %v405
                %v407 = vld [vmem:[%s391 + $0x70] sm:$0xff]
                %408 = vst [vmem:[%s392 + $0x38] sm:$0xff] %v407
              $region83: #{tpu_custom_call.1} parent=77 // loop_footer
                %s390 = sadd.s32 1, %s386
              $region84: #{tpu_custom_call.1} parent=77 // loop_footer_branch
                %385 = sbr.rel target = $region80
              $region85: #{tpu_custom_call.1} parent=77 // loop_exit
                _
            $region78: #{tpu_custom_call.1} parent=69 // pred_fallthru
              _
          $region70: #{tpu_custom_call.1} parent=65 // pred_fallthru
            _
          %437 = vnop
        $region66: #{tpu_custom_call.1} parent=15 // pred_fallthru
          _
        // Predicated region
        $region101: #{tpu_custom_call.1} parent=15 // pred_check
          %p438 = pneg %p153
        $region102: #{tpu_custom_call.1} parent=15 // pred_check_branch
          %440 = sbr.rel (%p438) target = $region104
        $region103: #{tpu_custom_call.1} parent=15 // pred_region
          %s441 = smul.u32 16, %s24
          %p442 = scmp.lt.s32.totalorder %s441, 31
          %s443 = scalar_select %p442, %s441, 31
          %s444 = smul.addr %s443, 8
          %s445 = scalar_lea.vmem %s4, %s444
          %s446 = smul.u32 16, %s24
        $region104: #{tpu_custom_call.1} parent=15 // pred_fallthru
          _
        // Predicated region
        $region105: #{tpu_custom_call.1} parent=15 // pred_check
          %p447 = pneg %p179
        $region106: #{tpu_custom_call.1} parent=15 // pred_check_branch
          %449 = sbr.rel (%p447) target = $region108
        $region107: #{tpu_custom_call.1} parent=15 // pred_region
          %p450 = scmp.lt.s32.totalorder %s25, 1
          %s451 = scalar_select %p450, %s25, 1
          %s452 = scalar_lea.vmem %s5, %s451
        $region108: #{tpu_custom_call.1} parent=15 // pred_fallthru
          _
        // Predicated region
        $region109: #{tpu_custom_call.1} parent=15 // pred_check
          %p453 = pneg %p205
        $region110: #{tpu_custom_call.1} parent=15 // pred_check_branch
          %455 = sbr.rel (%p453) target = $region112
        $region111: #{tpu_custom_call.1} parent=15 // pred_region
          %s456 = smul.u32 16, %s24
          %p457 = scmp.lt.s32.totalorder %s456, 31
          %s458 = scalar_select %p457, %s456, 31
          %s459 = smul.addr %s458, 8
          %s460 = scalar_lea.vmem %s6, %s459
          %s461 = smul.u32 16, %s24
        $region112: #{tpu_custom_call.1} parent=15 // pred_fallthru
          _
        // Predicated region
        $region113: #{tpu_custom_call.1} parent=15 // pred_check
          %p462 = pneg %p231
        $region114: #{tpu_custom_call.1} parent=15 // pred_check_branch
          %464 = sbr.rel (%p462) target = $region116
        $region115: #{tpu_custom_call.1} parent=15 // pred_region
          %p465 = scmp.lt.s32.totalorder %s25, 1
          %s466 = scalar_select %p465, %s25, 1
          %s467 = scalar_lea.vmem %s7, %s466
        $region116: #{tpu_custom_call.1} parent=15 // pred_fallthru
          _
      $region16: #{tpu_custom_call.1} parent=5 // pred_fallthru
        _
      %p468 = scmp.le.s32.totalorder 1, %s17
      %p469 = scmp.lt.s32.totalorder %s17, 5
      %p470 = pnand %p468, %p469
      %p471 = pneg %p470
      // Predicated region
      $region117: #{tpu_custom_call.1} parent=5 // pred_check
        _
      $region118: #{tpu_custom_call.1} parent=5 // pred_check_branch
        %473 = sbr.rel (%p470) target = $region120
      $region119: #{tpu_custom_call.1} parent=5 // pred_region
        %s474 = ssub.s32 %s17, 1
        %s475 = sand.u32 %s68, 1
        %s476 = sand.u32 %s68, 1
        %s477 = smul.addr %s476, 64
        %s478 = scalar_lea.vmem [#allocation2], %s477
        // Predicated region
        $region121: #{tpu_custom_call.1} parent=119 // pred_check
          %p479 = pneg %p81
        $region122: #{tpu_custom_call.1} parent=119 // pred_check_branch
          %481 = sbr.rel (%p479) target = $region124
        $region123: #{tpu_custom_call.1} parent=119 // pred_region
          _
        $region124: #{tpu_custom_call.1} parent=119 // pred_fallthru
          _
        %s482 = sand.u32 %s120, 1
        %s483 = sand.u32 %s120, 1
        %s484 = smul.addr %s483, 64
        %s485 = scalar_lea.vmem [#allocation3], %s484
        // Predicated region
        $region125: #{tpu_custom_call.1} parent=119 // pred_check
          %p486 = pneg %p133
        $region126: #{tpu_custom_call.1} parent=119 // pred_check_branch
          %488 = sbr.rel (%p486) target = $region128
        $region127: #{tpu_custom_call.1} parent=119 // pred_region
          _
        $region128: #{tpu_custom_call.1} parent=119 // pred_fallthru
          _
        %s489 = smul.u32 16, %s26
        %p490 = scmp.lt.s32.totalorder %s489, 31
        %s491 = scalar_select %p490, %s489, 31
        %s492 = smul.addr %s491, 8
        %s493 = scalar_lea.vmem %s0, %s492
        %p494 = pneg %p55
        %p495 = pneg %p52
        %s496 = sand.u32 %s68, 1
        %s497 = sand.u32 %s68, 1
        %s498 = smul.addr %s497, 64
        %s499 = scalar_lea.vmem [#allocation2], %s498
        %p500 = pneg %p81
        %p501 = pneg %p78
        %s502 = smul.u32 16, %s26
        %p503 = scmp.lt.s32.totalorder %s502, 31
        %s504 = scalar_select %p503, %s502, 31
        %s505 = smul.addr %s504, 8
        %s506 = scalar_lea.vmem %s2, %s505
        %p507 = pneg %p107
        %p508 = pneg %p104
        %s509 = sand.u32 %s120, 1
        %s510 = sand.u32 %s120, 1
        %s511 = smul.addr %s510, 64
        %s512 = scalar_lea.vmem [#allocation3], %s511
        %p513 = pneg %p133
        %p514 = pneg %p130
        %s515 = smul.u32 16, %s26
        %p516 = scmp.lt.s32.totalorder %s515, 31
        %s517 = scalar_select %p516, %s515, 31
        %s518 = smul.addr %s517, 8
        %s519 = scalar_lea.vmem %s4, %s518
        %p520 = pneg %p159
        %p521 = pneg %p156
        %p522 = scmp.lt.s32.totalorder %s27, 1
        %s523 = scalar_select %p522, %s27, 1
        %s524 = scalar_lea.vmem %s5, %s523
        %p525 = pneg %p185
        %p526 = pneg %p182
        %s527 = smul.u32 16, %s26
        %p528 = scmp.lt.s32.totalorder %s527, 31
        %s529 = scalar_select %p528, %s527, 31
        %s530 = smul.addr %s529, 8
        %s531 = scalar_lea.vmem %s6, %s530
        %p532 = pneg %p211
        %p533 = pneg %p208
        %p534 = scmp.lt.s32.totalorder %s27, 1
        %s535 = scalar_select %p534, %s27, 1
        %s536 = scalar_lea.vmem %s7, %s535
        %p537 = pneg %p237
        %p538 = pneg %p234
        %p539 = pneg %p263
        %p540 = pneg %p260
        %s541 = sand.u32 %s250, 1
        %s542 = scalar_lea.sflag [#allocation5], %s541
        %s543 = sand.u32 %s250, 1
        %s544 = smul.addr %s543, 8
        %s545 = scalar_lea.vmem [#allocation4], %s544
        %s546 = smul.u32 16, %s26
        %p547 = scmp.lt.s32.totalorder %s546, 31
        %s548 = scalar_select %p547, %s546, 31
        %s549 = smul.addr %s548, 8
        %s550 = scalar_lea.vmem %s0, %s549
        %s551 = smul.u32 16, %s26
        %s552 = smul.u32 16, %s26
        %p553 = scmp.lt.s32.totalorder %s552, 31
        %s554 = scalar_select %p553, %s552, 31
        %s555 = smul.addr %s554, 8
        %s556 = scalar_lea.vmem %s2, %s555
        %s557 = smul.u32 16, %s26
        %s558 = smul.u32 16, %s26
        %p559 = scmp.lt.s32.totalorder %s558, 31
        %s560 = scalar_select %p559, %s558, 31
        %s561 = smul.addr %s560, 8
        %s562 = scalar_lea.vmem %s4, %s561
        %s563 = smul.u32 16, %s26
        %p564 = scmp.lt.s32.totalorder %s27, 1
        %s565 = scalar_select %p564, %s27, 1
        %s566 = scalar_lea.vmem %s5, %s565
        %s567 = smul.u32 16, %s26
        %p568 = scmp.lt.s32.totalorder %s567, 31
        %s569 = scalar_select %p568, %s567, 31
        %s570 = smul.addr %s569, 8
        %s571 = scalar_lea.vmem %s6, %s570
        %s572 = smul.u32 16, %s26
        %p573 = scmp.lt.s32.totalorder %s27, 1
        %s574 = scalar_select %p573, %s27, 1
        %s575 = scalar_lea.vmem %s7, %s574
        %p576 = scmp.eq.s32.totalorder %s27, 0
        // Predicated region
        $region129: #{tpu_custom_call.1} parent=119 // pred_check
          %p577 = pneg %p576
        $region130: #{tpu_custom_call.1} parent=119 // pred_check_branch
          %579 = sbr.rel (%p577) target = $region132
        $region131: #{tpu_custom_call.1} parent=119 // pred_region
          %580 = vst [vmem:[%s545] sm:$0xff] 0.0
        $region132: #{tpu_custom_call.1} parent=119 // pred_fallthru
          _
        %v581 = vld [vmem:[%s550] sm:$0xff]
        %v582 = vld [vmem:[%s550 + $0x8] sm:$0xff]
        %v583 = vld [vmem:[%s550 + $0x10] sm:$0xff]
        %v584 = vld [vmem:[%s550 + $0x18] sm:$0xff]
        %v585 = vld [vmem:[%s550 + $0x20] sm:$0xff]
        %v586 = vld [vmem:[%s550 + $0x28] sm:$0xff]
        %v587 = vld [vmem:[%s550 + $0x30] sm:$0xff]
        %v588 = vld [vmem:[%s550 + $0x38] sm:$0xff]
        %v589 = vld [vmem:[%s550 + $0x40] sm:$0xff]
        %v590 = vld [vmem:[%s550 + $0x48] sm:$0xff]
        %v591 = vld [vmem:[%s550 + $0x50] sm:$0xff]
        %v592 = vld [vmem:[%s550 + $0x58] sm:$0xff]
        %v593 = vld [vmem:[%s550 + $0x60] sm:$0xff]
        %v594 = vld [vmem:[%s550 + $0x68] sm:$0xff]
        %v595 = vld [vmem:[%s550 + $0x70] sm:$0xff]
        %v596 = vld [vmem:[%s550 + $0x78] sm:$0xff]
        %v597 = vld [vmem:[%s485] sm:$0xff]
        %v598 = vld [vmem:[%s485 + $0x8] sm:$0xff]
        %v599 = vld [vmem:[%s485 + $0x10] sm:$0xff]
        %v600 = vld [vmem:[%s485 + $0x18] sm:$0xff]
        %v601 = vld [vmem:[%s485 + $0x20] sm:$0xff]
        %v602 = vld [vmem:[%s485 + $0x28] sm:$0xff]
        %v603 = vld [vmem:[%s485 + $0x30] sm:$0xff]
        %v604 = vld [vmem:[%s485 + $0x38] sm:$0xff]
        %v605 = vld [vmem:[%s562] sm:$0xff]
        %v606 = vld [vmem:[%s562 + $0x8] sm:$0xff]
        %v607 = vld [vmem:[%s562 + $0x10] sm:$0xff]
        %v608 = vld [vmem:[%s562 + $0x18] sm:$0xff]
        %v609 = vld [vmem:[%s562 + $0x20] sm:$0xff]
        %v610 = vld [vmem:[%s562 + $0x28] sm:$0xff]
        %v611 = vld [vmem:[%s562 + $0x30] sm:$0xff]
        %v612 = vld [vmem:[%s562 + $0x38] sm:$0xff]
        %v613 = vld [vmem:[%s562 + $0x40] sm:$0xff]
        %v614 = vld [vmem:[%s562 + $0x48] sm:$0xff]
        %v615 = vld [vmem:[%s562 + $0x50] sm:$0xff]
        %v616 = vld [vmem:[%s562 + $0x58] sm:$0xff]
        %v617 = vld [vmem:[%s562 + $0x60] sm:$0xff]
        %v618 = vld [vmem:[%s562 + $0x68] sm:$0xff]
        %v619 = vld [vmem:[%s562 + $0x70] sm:$0xff]
        %v620 = vld [vmem:[%s562 + $0x78] sm:$0xff]
        %v621 = vld [vmem:[%s575] sm:$0x1]
        %vm622 = vcmask 523264
        %v624 = vsel %vm622, %v581, 0
        %v627 = vsel %vm622, %v582, 0
        %v630 = vsel %vm622, %v583, 0
        %v633 = vsel %vm622, %v584, 0
        %v636 = vsel %vm622, %v585, 0
        %v639 = vsel %vm622, %v586, 0
        %v642 = vsel %vm622, %v587, 0
        %v645 = vsel %vm622, %v588, 0
        %v648 = vsel %vm622, %v589, 0
        %v651 = vsel %vm622, %v590, 0
        %v654 = vsel %vm622, %v591, 0
        %v657 = vsel %vm622, %v592, 0
        %v660 = vsel %vm622, %v593, 0
        %v663 = vsel %vm622, %v594, 0
        %v666 = vsel %vm622, %v595, 0
        %v669 = vsel %vm622, %v596, 0
        %671 = vmatprep.subr.mxu0 0.0
        %672 = vmatpush1.msra.mxu0 %v597
        %673 = vmatprep.subr.mxu0 0.0
        %674 = vmatpush1.msra.mxu0 %v598
        %675 = vmatprep.subr.mxu0 0.0
        %676 = vmatpush1.msra.mxu0 %v599
        %677 = vmatprep.subr.mxu0 0.0
        %678 = vmatpush1.msra.mxu0 %v600
        %679 = vmatprep.subr.mxu0 0.0
        %680 = vmatpush1.msra.mxu0 %v601
        %681 = vmatprep.subr.mxu0 0.0
        %682 = vmatpush1.msra.mxu0 %v602
        %683 = vmatprep.subr.mxu0 0.0
        %684 = vmatpush1.msra.mxu0 %v603
        %685 = vmatprep.subr.mxu0 0.0
        %686 = vmatpush1.msra.mxu0 %v604
        %687 = vmatprep.subr.mxu0 0.0
        %688 = vmatpush1.msra.mxu0 0.0
        %689 = vmatprep.subr.mxu0 0.0
        %690 = vmatpush1.msra.mxu0 0.0
        %691 = vmatprep.subr.mxu0 0.0
        %692 = vmatpush1.msra.mxu0 0.0
        %693 = vmatprep.subr.mxu0 0.0
        %694 = vmatpush1.msra.mxu0 0.0
        %695 = vmatprep.subr.mxu0 0.0
        %696 = vmatpush1.msra.mxu0 0.0
        %697 = vmatprep.subr.mxu0 0.0
        %698 = vmatpush1.msra.mxu0 0.0
        %699 = vmatprep.subr.mxu0 0.0
        %700 = vmatpush1.msra.mxu0 0.0
        %701 = vmatprep.subr.mxu0 0.0
        %702 = vmatpush1.msra.mxu0 0.0
        %703 = vmatprep.subr.mxu0 0.0
        %704 = vmatpush1.msra.mxu0 0.0
        %705 = vmatprep.subr.mxu0 0.0
        %706 = vmatpush1.msra.mxu0 0.0
        %707 = vmatprep.subr.mxu0 0.0
        %708 = vmatpush1.msra.mxu0 0.0
        %709 = vmatprep.subr.mxu0 0.0
        %710 = vmatpush1.msra.mxu0 0.0
        %711 = vmatprep.subr.mxu0 0.0
        %712 = vmatpush1.msra.mxu0 0.0
        %713 = vmatprep.subr.mxu0 0.0
        %714 = vmatpush1.msra.mxu0 0.0
        %715 = vmatprep.subr.mxu0 0.0
        %716 = vmatpush1.msra.mxu0 0.0
        %717 = vmatprep.subr.mxu0 0.0
        %718 = vmatpush1.msra.mxu0 0.0
        %719 = vmatprep.subr.mxu0 0.0
        %720 = vmatpush1.msra.mxu0 0.0
        %721 = vmatprep.subr.mxu0 0.0
        %722 = vmatpush1.msra.mxu0 0.0
        %723 = vmatprep.subr.mxu0 0.0
        %724 = vmatpush1.msra.mxu0 0.0
        %725 = vmatprep.subr.mxu0 0.0
        %726 = vmatpush1.msra.mxu0 0.0
        %727 = vmatprep.subr.mxu0 0.0
        %728 = vmatpush1.msra.mxu0 0.0
        %729 = vmatprep.subr.mxu0 0.0
        %730 = vmatpush1.msra.mxu0 0.0
        %731 = vmatprep.subr.mxu0 0.0
        %732 = vmatpush1.msra.mxu0 0.0
        %733 = vmatprep.subr.mxu0 0.0
        %734 = vmatpush1.msra.mxu0 0.0
        %735 = vmatprep.mubr.f32.mxu0 0.0
        %736 = vmatmul.mubr.f32.gmra.mrb[0].mxu0 %v624
        %v737 = vpop.f32.mrb[0].mxu0
        %v738 = vadd.f32 0.0, %v737
        %v739 = vpop.f32.mrb[0].mxu0
        %740 = vmatprep.mubr.f32.mxu0 0.0
        %741 = vmatmul.mubr.f32.gmra.mrb[0].mxu0 %v627
        %v742 = vpop.f32.mrb[0].mxu0
        %v743 = vadd.f32 0.0, %v742
        %v744 = vpop.f32.mrb[0].mxu0
        %745 = vmatprep.mubr.f32.mxu0 0.0
        %746 = vmatmul.mubr.f32.gmra.mrb[0].mxu0 %v630
        %v747 = vpop.f32.mrb[0].mxu0
        %v748 = vadd.f32 0.0, %v747
        %v749 = vpop.f32.mrb[0].mxu0
        %750 = vmatprep.mubr.f32.mxu0 0.0
        %751 = vmatmul.mubr.f32.gmra.mrb[0].mxu0 %v633
        %v752 = vpop.f32.mrb[0].mxu0
        %v753 = vadd.f32 0.0, %v752
        %v754 = vpop.f32.mrb[0].mxu0
        %755 = vmatprep.mubr.f32.mxu0 0.0
        %756 = vmatmul.mubr.f32.gmra.mrb[0].mxu0 %v636
        %v757 = vpop.f32.mrb[0].mxu0
        %v758 = vadd.f32 0.0, %v757
        %v759 = vpop.f32.mrb[0].mxu0
        %760 = vmatprep.mubr.f32.mxu0 0.0
        %761 = vmatmul.mubr.f32.gmra.mrb[0].mxu0 %v639
        %v762 = vpop.f32.mrb[0].mxu0
        %v763 = vadd.f32 0.0, %v762
        %v764 = vpop.f32.mrb[0].mxu0
        %765 = vmatprep.mubr.f32.mxu0 0.0
        %766 = vmatmul.mubr.f32.gmra.mrb[0].mxu0 %v642
        %v767 = vpop.f32.mrb[0].mxu0
        %v768 = vadd.f32 0.0, %v767
        %v769 = vpop.f32.mrb[0].mxu0
        %770 = vmatprep.mubr.f32.mxu0 0.0
        %771 = vmatmul.mubr.f32.gmra.mrb[0].mxu0 %v645
        %v772 = vpop.f32.mrb[0].mxu0
        %v773 = vadd.f32 0.0, %v772
        %v774 = vpop.f32.mrb[0].mxu0
        %775 = vmatprep.mubr.f32.mxu0 0.0
        %776 = vmatmul.mubr.f32.gmra.mrb[0].mxu0 %v648
        %v777 = vpop.f32.mrb[0].mxu0
        %v778 = vadd.f32 0.0, %v777
        %v779 = vpop.f32.mrb[0].mxu0
        %780 = vmatprep.mubr.f32.mxu0 0.0
        %781 = vmatmul.mubr.f32.gmra.mrb[0].mxu0 %v651
        %v782 = vpop.f32.mrb[0].mxu0
        %v783 = vadd.f32 0.0, %v782
        %v784 = vpop.f32.mrb[0].mxu0
        %785 = vmatprep.mubr.f32.mxu0 0.0
        %786 = vmatmul.mubr.f32.gmra.mrb[0].mxu0 %v654
        %v787 = vpop.f32.mrb[0].mxu0
        %v788 = vadd.f32 0.0, %v787
        %v789 = vpop.f32.mrb[0].mxu0
        %790 = vmatprep.mubr.f32.mxu0 0.0
        %791 = vmatmul.mubr.f32.gmra.mrb[0].mxu0 %v657
        %v792 = vpop.f32.mrb[0].mxu0
        %v793 = vadd.f32 0.0, %v792
        %v794 = vpop.f32.mrb[0].mxu0
        %795 = vmatprep.mubr.f32.mxu0 0.0
        %796 = vmatmul.mubr.f32.gmra.mrb[0].mxu0 %v660
        %v797 = vpop.f32.mrb[0].mxu0
        %v798 = vadd.f32 0.0, %v797
        %v799 = vpop.f32.mrb[0].mxu0
        %800 = vmatprep.mubr.f32.mxu0 0.0
        %801 = vmatmul.mubr.f32.gmra.mrb[0].mxu0 %v663
        %v802 = vpop.f32.mrb[0].mxu0
        %v803 = vadd.f32 0.0, %v802
        %v804 = vpop.f32.mrb[0].mxu0
        %805 = vmatprep.mubr.f32.mxu0 0.0
        %806 = vmatmul.mubr.f32.gmra.mrb[0].mxu0 %v666
        %v807 = vpop.f32.mrb[0].mxu0
        %v808 = vadd.f32 0.0, %v807
        %v809 = vpop.f32.mrb[0].mxu0
        %810 = vmatprep.mubr.f32.mxu0 0.0
        %811 = vmatmul.mubr.f32.gmra.mrb[0].mxu0 %v669
        %v812 = vpop.f32.mrb[0].mxu0
        %v813 = vadd.f32 0.0, %v812
        %v814 = vpop.f32.mrb[0].mxu0
        %815 = vdwg.mxu0
        %v816 = vld [vmem:[%s545] sm:$0xff]
        %v817 = vmul.f32 %v738, 0.5
        %v818 = vmul.f32 %v743, 0.5
        %v819 = vmul.f32 %v748, 0.5
        %v820 = vmul.f32 %v753, 0.5
        %v821 = vmul.f32 %v758, 0.5
        %v822 = vmul.f32 %v763, 0.5
        %v823 = vmul.f32 %v768, 0.5
        %v824 = vmul.f32 %v773, 0.5
        %v825 = vmul.f32 %v778, 0.5
        %v826 = vmul.f32 %v783, 0.5
        %v827 = vmul.f32 %v788, 0.5
        %v828 = vmul.f32 %v793, 0.5
        %v829 = vmul.f32 %v798, 0.5
        %v830 = vmul.f32 %v803, 0.5
        %v831 = vmul.f32 %v808, 0.5
        %v832 = vmul.f32 %v813, 0.5
        %834 = vset.pattern.permute.xlu0 0
        %835 = vperm.xlu0 %834, %v605
        %v836 = vpop.permute.xlu0 %835
        %839 = vset.pattern.permute.xlu0 0
        %840 = vperm.xlu0 %839, %v606
        %v841 = vpop.permute.xlu0 %840
        %844 = vset.pattern.permute.xlu0 0
        %845 = vperm.xlu0 %844, %v607
        %v846 = vpop.permute.xlu0 %845
        %849 = vset.pattern.permute.xlu0 0
        %850 = vperm.xlu0 %849, %v608
        %v851 = vpop.permute.xlu0 %850
        %854 = vset.pattern.permute.xlu0 0
        %855 = vperm.xlu0 %854, %v609
        %v856 = vpop.permute.xlu0 %855
        %859 = vset.pattern.permute.xlu0 0
        %860 = vperm.xlu0 %859, %v610
        %v861 = vpop.permute.xlu0 %860
        %864 = vset.pattern.permute.xlu0 0
        %865 = vperm.xlu0 %864, %v611
        %v866 = vpop.permute.xlu0 %865
        %869 = vset.pattern.permute.xlu0 0
        %870 = vperm.xlu0 %869, %v612
        %v871 = vpop.permute.xlu0 %870
        %874 = vset.pattern.permute.xlu0 0
        %875 = vperm.xlu0 %874, %v613
        %v876 = vpop.permute.xlu0 %875
        %879 = vset.pattern.permute.xlu0 0
        %880 = vperm.xlu0 %879, %v614
        %v881 = vpop.permute.xlu0 %880
        %884 = vset.pattern.permute.xlu0 0
        %885 = vperm.xlu0 %884, %v615
        %v886 = vpop.permute.xlu0 %885
        %889 = vset.pattern.permute.xlu0 0
        %890 = vperm.xlu0 %889, %v616
        %v891 = vpop.permute.xlu0 %890
        %894 = vset.pattern.permute.xlu0 0
        %895 = vperm.xlu0 %894, %v617
        %v896 = vpop.permute.xlu0 %895
        %899 = vset.pattern.permute.xlu0 0
        %900 = vperm.xlu0 %899, %v618
        %v901 = vpop.permute.xlu0 %900
        %904 = vset.pattern.permute.xlu0 0
        %905 = vperm.xlu0 %904, %v619
        %v906 = vpop.permute.xlu0 %905
        %909 = vset.pattern.permute.xlu0 0
        %910 = vperm.xlu0 %909, %v620
        %v911 = vpop.permute.xlu0 %910
        %v913 = vsub.f32 %v817, %v836
        %v914 = vsub.f32 %v818, %v841
        %v915 = vsub.f32 %v819, %v846
        %v916 = vsub.f32 %v820, %v851
        %v917 = vsub.f32 %v821, %v856
        %v918 = vsub.f32 %v822, %v861
        %v919 = vsub.f32 %v823, %v866
        %v920 = vsub.f32 %v824, %v871
        %v921 = vsub.f32 %v825, %v876
        %v922 = vsub.f32 %v826, %v881
        %v923 = vsub.f32 %v827, %v886
        %v924 = vsub.f32 %v828, %v891
        %v925 = vsub.f32 %v829, %v896
        %v926 = vsub.f32 %v830, %v901
        %v927 = vsub.f32 %v831, %v906
        %v928 = vsub.f32 %v832, %v911
        %v930 = vlaneseq
        %v931 = vshrl.u32 %v930, 7
        %v932 = vsub.s32 0, %v931
        %v933 = vrot.slane %v621, %v932
        %v935 = vsub.f32 %v913, %v933
        %v936 = vsub.f32 %v914, %v933
        %v937 = vsub.f32 %v915, %v933
        %v938 = vsub.f32 %v916, %v933
        %v939 = vsub.f32 %v917, %v933
        %v940 = vsub.f32 %v918, %v933
        %v941 = vsub.f32 %v919, %v933
        %v942 = vsub.f32 %v920, %v933
        %v943 = vsub.f32 %v921, %v933
        %v944 = vsub.f32 %v922, %v933
        %v945 = vsub.f32 %v923, %v933
        %v946 = vsub.f32 %v924, %v933
        %v947 = vsub.f32 %v925, %v933
        %v948 = vsub.f32 %v926, %v933
        %v949 = vsub.f32 %v927, %v933
        %v950 = vsub.f32 %v928, %v933
        %v951 = vmul.f32 %v935, 1.442695
        %v952 = vpow.pop %v951
        %v953 = vmul.f32 %v936, 1.442695
        %v954 = vpow.pop %v953
        %v955 = vmul.f32 %v937, 1.442695
        %v956 = vpow.pop %v955
        %v957 = vmul.f32 %v938, 1.442695
        %v958 = vpow.pop %v957
        %v959 = vmul.f32 %v939, 1.442695
        %v960 = vpow.pop %v959
        %v961 = vmul.f32 %v940, 1.442695
        %v962 = vpow.pop %v961
        %v963 = vmul.f32 %v941, 1.442695
        %v964 = vpow.pop %v963
        %v965 = vmul.f32 %v942, 1.442695
        %v966 = vpow.pop %v965
        %v967 = vmul.f32 %v943, 1.442695
        %v968 = vpow.pop %v967
        %v969 = vmul.f32 %v944, 1.442695
        %v970 = vpow.pop %v969
        %v971 = vmul.f32 %v945, 1.442695
        %v972 = vpow.pop %v971
        %v973 = vmul.f32 %v946, 1.442695
        %v974 = vpow.pop %v973
        %v975 = vmul.f32 %v947, 1.442695
        %v976 = vpow.pop %v975
        %v977 = vmul.f32 %v948, 1.442695
        %v978 = vpow.pop %v977
        %v979 = vmul.f32 %v949, 1.442695
        %v980 = vpow.pop %v979
        %v981 = vmul.f32 %v950, 1.442695
        %v982 = vpow.pop %v981
        %v983 = vadd.f32 %v952, %v954
        %v984 = vadd.f32 %v983, %v956
        %v985 = vadd.f32 %v984, %v958
        %v986 = vadd.f32 %v985, %v960
        %v987 = vadd.f32 %v986, %v962
        %v988 = vadd.f32 %v987, %v964
        %v989 = vadd.f32 %v988, %v966
        %v990 = vadd.f32 %v989, %v968
        %v991 = vadd.f32 %v990, %v970
        %v992 = vadd.f32 %v991, %v972
        %v993 = vadd.f32 %v992, %v974
        %v994 = vadd.f32 %v993, %v976
        %v995 = vadd.f32 %v994, %v978
        %v996 = vadd.f32 %v995, %v980
        %v997 = vadd.f32 %v996, %v982
        %998 = vadd.xlane.f32.xlu0 %v997
        %v999 = vpop.xlane.xlu0 %998
        %v1000 = vrot.slane %v999, 4
        %v1001 = vadd.f32 %v999, %v1000
        %v1002 = vrot.slane %v1001, 2
        %v1003 = vadd.f32 %v1001, %v1002
        %v1004 = vrot.slane %v1003, 1
        %v1005 = vadd.f32 %v1003, %v1004
        %s1006 = vtos %v1005
        %s1007 = smul.f32 %s1006, -2.0
        %v1008 = vstv %s1007
        %v1009 = vadd.f32 %v816, %v1008
        %1010 = vst [vmem:[%s545] sm:$0xff] %v1009
        %p1011 = scmp.ge.s32.totalorder %s27, %s26
        // Predicated region
        $region133: #{tpu_custom_call.1} parent=119 // pred_check
          %p1012 = pneg %p1011
        $region134: #{tpu_custom_call.1} parent=119 // pred_check_branch
          %1014 = sbr.rel (%p1012) target = $region136
        $region135: #{tpu_custom_call.1} parent=119 // pred_region
          %v1015 = vld [vmem:[%s478] sm:$0xff]
          %v1016 = vld [vmem:[%s478 + $0x8] sm:$0xff]
          %v1017 = vld [vmem:[%s478 + $0x10] sm:$0xff]
          %v1018 = vld [vmem:[%s478 + $0x18] sm:$0xff]
          %v1019 = vld [vmem:[%s478 + $0x20] sm:$0xff]
          %v1020 = vld [vmem:[%s478 + $0x28] sm:$0xff]
          %v1021 = vld [vmem:[%s478 + $0x30] sm:$0xff]
          %v1022 = vld [vmem:[%s478 + $0x38] sm:$0xff]
          %v1023 = vld [vmem:[%s556] sm:$0xff]
          %v1024 = vld [vmem:[%s556 + $0x8] sm:$0xff]
          %v1025 = vld [vmem:[%s556 + $0x10] sm:$0xff]
          %v1026 = vld [vmem:[%s556 + $0x18] sm:$0xff]
          %v1027 = vld [vmem:[%s556 + $0x20] sm:$0xff]
          %v1028 = vld [vmem:[%s556 + $0x28] sm:$0xff]
          %v1029 = vld [vmem:[%s556 + $0x30] sm:$0xff]
          %v1030 = vld [vmem:[%s556 + $0x38] sm:$0xff]
          %v1031 = vld [vmem:[%s556 + $0x40] sm:$0xff]
          %v1032 = vld [vmem:[%s556 + $0x48] sm:$0xff]
          %v1033 = vld [vmem:[%s556 + $0x50] sm:$0xff]
          %v1034 = vld [vmem:[%s556 + $0x58] sm:$0xff]
          %v1035 = vld [vmem:[%s556 + $0x60] sm:$0xff]
          %v1036 = vld [vmem:[%s556 + $0x68] sm:$0xff]
          %v1037 = vld [vmem:[%s556 + $0x70] sm:$0xff]
          %v1038 = vld [vmem:[%s556 + $0x78] sm:$0xff]
          %v1039 = vld [vmem:[%s566] sm:$0x1]
          %v1040 = vld [vmem:[%s571] sm:$0xff]
          %v1041 = vld [vmem:[%s571 + $0x8] sm:$0xff]
          %v1042 = vld [vmem:[%s571 + $0x10] sm:$0xff]
          %v1043 = vld [vmem:[%s571 + $0x18] sm:$0xff]
          %v1044 = vld [vmem:[%s571 + $0x20] sm:$0xff]
          %v1045 = vld [vmem:[%s571 + $0x28] sm:$0xff]
          %v1046 = vld [vmem:[%s571 + $0x30] sm:$0xff]
          %v1047 = vld [vmem:[%s571 + $0x38] sm:$0xff]
          %v1048 = vld [vmem:[%s571 + $0x40] sm:$0xff]
          %v1049 = vld [vmem:[%s571 + $0x48] sm:$0xff]
          %v1050 = vld [vmem:[%s571 + $0x50] sm:$0xff]
          %v1051 = vld [vmem:[%s571 + $0x58] sm:$0xff]
          %v1052 = vld [vmem:[%s571 + $0x60] sm:$0xff]
          %v1053 = vld [vmem:[%s571 + $0x68] sm:$0xff]
          %v1054 = vld [vmem:[%s571 + $0x70] sm:$0xff]
          %v1055 = vld [vmem:[%s571 + $0x78] sm:$0xff]
          %1056 = vmatprep.subr.mxu0 0.0
          %1057 = vmatpush1.msra.mxu0 %v1015
          %1058 = vmatprep.subr.mxu0 0.0
          %1059 = vmatpush1.msra.mxu0 %v1016
          %1060 = vmatprep.subr.mxu0 0.0
          %1061 = vmatpush1.msra.mxu0 %v1017
          %1062 = vmatprep.subr.mxu0 0.0
          %1063 = vmatpush1.msra.mxu0 %v1018
          %1064 = vmatprep.subr.mxu0 0.0
          %1065 = vmatpush1.msra.mxu0 %v1019
          %1066 = vmatprep.subr.mxu0 0.0
          %1067 = vmatpush1.msra.mxu0 %v1020
          %1068 = vmatprep.subr.mxu0 0.0
          %1069 = vmatpush1.msra.mxu0 %v1021
          %1070 = vmatprep.subr.mxu0 0.0
          %1071 = vmatpush1.msra.mxu0 %v1022
          %1072 = vmatprep.subr.mxu0 0.0
          %1073 = vmatpush1.msra.mxu0 0.0
          %1074 = vmatprep.subr.mxu0 0.0
          %1075 = vmatpush1.msra.mxu0 0.0
          %1076 = vmatprep.subr.mxu0 0.0
          %1077 = vmatpush1.msra.mxu0 0.0
          %1078 = vmatprep.subr.mxu0 0.0
          %1079 = vmatpush1.msra.mxu0 0.0
          %1080 = vmatprep.subr.mxu0 0.0
          %1081 = vmatpush1.msra.mxu0 0.0
          %1082 = vmatprep.subr.mxu0 0.0
          %1083 = vmatpush1.msra.mxu0 0.0
          %1084 = vmatprep.subr.mxu0 0.0
          %1085 = vmatpush1.msra.mxu0 0.0
          %1086 = vmatprep.subr.mxu0 0.0
          %1087 = vmatpush1.msra.mxu0 0.0
          %1088 = vmatprep.subr.mxu0 0.0
          %1089 = vmatpush1.msra.mxu0 0.0
          %1090 = vmatprep.subr.mxu0 0.0
          %1091 = vmatpush1.msra.mxu0 0.0
          %1092 = vmatprep.subr.mxu0 0.0
          %1093 = vmatpush1.msra.mxu0 0.0
          %1094 = vmatprep.subr.mxu0 0.0
          %1095 = vmatpush1.msra.mxu0 0.0
          %1096 = vmatprep.subr.mxu0 0.0
          %1097 = vmatpush1.msra.mxu0 0.0
          %1098 = vmatprep.subr.mxu0 0.0
          %1099 = vmatpush1.msra.mxu0 0.0
          %1100 = vmatprep.subr.mxu0 0.0
          %1101 = vmatpush1.msra.mxu0 0.0
          %1102 = vmatprep.subr.mxu0 0.0
          %1103 = vmatpush1.msra.mxu0 0.0
          %1104 = vmatprep.subr.mxu0 0.0
          %1105 = vmatpush1.msra.mxu0 0.0
          %1106 = vmatprep.subr.mxu0 0.0
          %1107 = vmatpush1.msra.mxu0 0.0
          %1108 = vmatprep.subr.mxu0 0.0
          %1109 = vmatpush1.msra.mxu0 0.0
          %1110 = vmatprep.subr.mxu0 0.0
          %1111 = vmatpush1.msra.mxu0 0.0
          %1112 = vmatprep.subr.mxu0 0.0
          %1113 = vmatpush1.msra.mxu0 0.0
          %1114 = vmatprep.subr.mxu0 0.0
          %1115 = vmatpush1.msra.mxu0 0.0
          %1116 = vmatprep.subr.mxu0 0.0
          %1117 = vmatpush1.msra.mxu0 0.0
          %1118 = vmatprep.subr.mxu0 0.0
          %1119 = vmatpush1.msra.mxu0 0.0
          %1120 = vmatprep.mubr.f32.mxu0 0.0
          %1121 = vmatmul.mubr.f32.gmra.mrb[0].mxu0 %v624
          %v1122 = vpop.f32.mrb[0].mxu0
          %v1123 = vadd.f32 0.0, %v1122
          %v1124 = vpop.f32.mrb[0].mxu0
          %1125 = vmatprep.mubr.f32.mxu0 0.0
          %1126 = vmatmul.mubr.f32.gmra.mrb[0].mxu0 %v627
          %v1127 = vpop.f32.mrb[0].mxu0
          %v1128 = vadd.f32 0.0, %v1127
          %v1129 = vpop.f32.mrb[0].mxu0
          %1130 = vmatprep.mubr.f32.mxu0 0.0
          %1131 = vmatmul.mubr.f32.gmra.mrb[0].mxu0 %v630
          %v1132 = vpop.f32.mrb[0].mxu0
          %v1133 = vadd.f32 0.0, %v1132
          %v1134 = vpop.f32.mrb[0].mxu0
          %1135 = vmatprep.mubr.f32.mxu0 0.0
          %1136 = vmatmul.mubr.f32.gmra.mrb[0].mxu0 %v633
          %v1137 = vpop.f32.mrb[0].mxu0
          %v1138 = vadd.f32 0.0, %v1137
          %v1139 = vpop.f32.mrb[0].mxu0
          %1140 = vmatprep.mubr.f32.mxu0 0.0
          %1141 = vmatmul.mubr.f32.gmra.mrb[0].mxu0 %v636
          %v1142 = vpop.f32.mrb[0].mxu0
          %v1143 = vadd.f32 0.0, %v1142
          %v1144 = vpop.f32.mrb[0].mxu0
          %1145 = vmatprep.mubr.f32.mxu0 0.0
          %1146 = vmatmul.mubr.f32.gmra.mrb[0].mxu0 %v639
          %v1147 = vpop.f32.mrb[0].mxu0
          %v1148 = vadd.f32 0.0, %v1147
          %v1149 = vpop.f32.mrb[0].mxu0
          %1150 = vmatprep.mubr.f32.mxu0 0.0
          %1151 = vmatmul.mubr.f32.gmra.mrb[0].mxu0 %v642
          %v1152 = vpop.f32.mrb[0].mxu0
          %v1153 = vadd.f32 0.0, %v1152
          %v1154 = vpop.f32.mrb[0].mxu0
          %1155 = vmatprep.mubr.f32.mxu0 0.0
          %1156 = vmatmul.mubr.f32.gmra.mrb[0].mxu0 %v645
          %v1157 = vpop.f32.mrb[0].mxu0
          %v1158 = vadd.f32 0.0, %v1157
          %v1159 = vpop.f32.mrb[0].mxu0
          %1160 = vmatprep.mubr.f32.mxu0 0.0
          %1161 = vmatmul.mubr.f32.gmra.mrb[0].mxu0 %v648
          %v1162 = vpop.f32.mrb[0].mxu0
          %v1163 = vadd.f32 0.0, %v1162
          %v1164 = vpop.f32.mrb[0].mxu0
          %1165 = vmatprep.mubr.f32.mxu0 0.0
          %1166 = vmatmul.mubr.f32.gmra.mrb[0].mxu0 %v651
          %v1167 = vpop.f32.mrb[0].mxu0
          %v1168 = vadd.f32 0.0, %v1167
          %v1169 = vpop.f32.mrb[0].mxu0
          %1170 = vmatprep.mubr.f32.mxu0 0.0
          %1171 = vmatmul.mubr.f32.gmra.mrb[0].mxu0 %v654
          %v1172 = vpop.f32.mrb[0].mxu0
          %v1173 = vadd.f32 0.0, %v1172
          %v1174 = vpop.f32.mrb[0].mxu0
          %1175 = vmatprep.mubr.f32.mxu0 0.0
          %1176 = vmatmul.mubr.f32.gmra.mrb[0].mxu0 %v657
          %v1177 = vpop.f32.mrb[0].mxu0
          %v1178 = vadd.f32 0.0, %v1177
          %v1179 = vpop.f32.mrb[0].mxu0
          %1180 = vmatprep.mubr.f32.mxu0 0.0
          %1181 = vmatmul.mubr.f32.gmra.mrb[0].mxu0 %v660
          %v1182 = vpop.f32.mrb[0].mxu0
          %v1183 = vadd.f32 0.0, %v1182
          %v1184 = vpop.f32.mrb[0].mxu0
          %1185 = vmatprep.mubr.f32.mxu0 0.0
          %1186 = vmatmul.mubr.f32.gmra.mrb[0].mxu0 %v663
          %v1187 = vpop.f32.mrb[0].mxu0
          %v1188 = vadd.f32 0.0, %v1187
          %v1189 = vpop.f32.mrb[0].mxu0
          %1190 = vmatprep.mubr.f32.mxu0 0.0
          %1191 = vmatmul.mubr.f32.gmra.mrb[0].mxu0 %v666
          %v1192 = vpop.f32.mrb[0].mxu0
          %v1193 = vadd.f32 0.0, %v1192
          %v1194 = vpop.f32.mrb[0].mxu0
          %1195 = vmatprep.mubr.f32.mxu0 0.0
          %1196 = vmatmul.mubr.f32.gmra.mrb[0].mxu0 %v669
          %v1197 = vpop.f32.mrb[0].mxu0
          %v1198 = vadd.f32 0.0, %v1197
          %v1199 = vpop.f32.mrb[0].mxu0
          %1200 = vdwg.mxu0
          %v1201 = vmul.f32 %v1123, 0.5
          %v1202 = vmul.f32 %v1128, 0.5
          %v1203 = vmul.f32 %v1133, 0.5
          %v1204 = vmul.f32 %v1138, 0.5
          %v1205 = vmul.f32 %v1143, 0.5
          %v1206 = vmul.f32 %v1148, 0.5
          %v1207 = vmul.f32 %v1153, 0.5
          %v1208 = vmul.f32 %v1158, 0.5
          %v1209 = vmul.f32 %v1163, 0.5
          %v1210 = vmul.f32 %v1168, 0.5
          %v1211 = vmul.f32 %v1173, 0.5
          %v1212 = vmul.f32 %v1178, 0.5
          %v1213 = vmul.f32 %v1183, 0.5
          %v1214 = vmul.f32 %v1188, 0.5
          %v1215 = vmul.f32 %v1193, 0.5
          %v1216 = vmul.f32 %v1198, 0.5
          %v1217 = vsub.f32 %v1201, %v836
          %v1218 = vsub.f32 %v1202, %v841
          %v1219 = vsub.f32 %v1203, %v846
          %v1220 = vsub.f32 %v1204, %v851
          %v1221 = vsub.f32 %v1205, %v856
          %v1222 = vsub.f32 %v1206, %v861
          %v1223 = vsub.f32 %v1207, %v866
          %v1224 = vsub.f32 %v1208, %v871
          %v1225 = vsub.f32 %v1209, %v876
          %v1226 = vsub.f32 %v1210, %v881
          %v1227 = vsub.f32 %v1211, %v886
          %v1228 = vsub.f32 %v1212, %v891
          %v1229 = vsub.f32 %v1213, %v896
          %v1230 = vsub.f32 %v1214, %v901
          %v1231 = vsub.f32 %v1215, %v906
          %v1232 = vsub.f32 %v1216, %v911
          %v1234 = vlaneseq
          %v1235 = vshrl.u32 %v1234, 7
          %v1236 = vsub.s32 0, %v1235
          %v1237 = vrot.slane %v1039, %v1236
          %v1239 = vsub.f32 %v1217, %v1237
          %v1240 = vsub.f32 %v1218, %v1237
          %v1241 = vsub.f32 %v1219, %v1237
          %v1242 = vsub.f32 %v1220, %v1237
          %v1243 = vsub.f32 %v1221, %v1237
          %v1244 = vsub.f32 %v1222, %v1237
          %v1245 = vsub.f32 %v1223, %v1237
          %v1246 = vsub.f32 %v1224, %v1237
          %v1247 = vsub.f32 %v1225, %v1237
          %v1248 = vsub.f32 %v1226, %v1237
          %v1249 = vsub.f32 %v1227, %v1237
          %v1250 = vsub.f32 %v1228, %v1237
          %v1251 = vsub.f32 %v1229, %v1237
          %v1252 = vsub.f32 %v1230, %v1237
          %v1253 = vsub.f32 %v1231, %v1237
          %v1254 = vsub.f32 %v1232, %v1237
          %v1255 = vmul.f32 %v1239, 1.442695
          %v1256 = vpow.pop %v1255
          %v1257 = vmul.f32 %v1240, 1.442695
          %v1258 = vpow.pop %v1257
          %v1259 = vmul.f32 %v1241, 1.442695
          %v1260 = vpow.pop %v1259
          %v1261 = vmul.f32 %v1242, 1.442695
          %v1262 = vpow.pop %v1261
          %v1263 = vmul.f32 %v1243, 1.442695
          %v1264 = vpow.pop %v1263
          %v1265 = vmul.f32 %v1244, 1.442695
          %v1266 = vpow.pop %v1265
          %v1267 = vmul.f32 %v1245, 1.442695
          %v1268 = vpow.pop %v1267
          %v1269 = vmul.f32 %v1246, 1.442695
          %v1270 = vpow.pop %v1269
          %v1271 = vmul.f32 %v1247, 1.442695
          %v1272 = vpow.pop %v1271
          %v1273 = vmul.f32 %v1248, 1.442695
          %v1274 = vpow.pop %v1273
          %v1275 = vmul.f32 %v1249, 1.442695
          %v1276 = vpow.pop %v1275
          %v1277 = vmul.f32 %v1250, 1.442695
          %v1278 = vpow.pop %v1277
          %v1279 = vmul.f32 %v1251, 1.442695
          %v1280 = vpow.pop %v1279
          %v1281 = vmul.f32 %v1252, 1.442695
          %v1282 = vpow.pop %v1281
          %v1283 = vmul.f32 %v1253, 1.442695
          %v1284 = vpow.pop %v1283
          %v1285 = vmul.f32 %v1254, 1.442695
          %v1286 = vpow.pop %v1285
          %v1288 = vsel %vm622, %v1023, 0
          %v1291 = vsel %vm622, %v1024, 0
          %v1294 = vsel %vm622, %v1025, 0
          %v1297 = vsel %vm622, %v1026, 0
          %v1300 = vsel %vm622, %v1027, 0
          %v1303 = vsel %vm622, %v1028, 0
          %v1306 = vsel %vm622, %v1029, 0
          %v1309 = vsel %vm622, %v1030, 0
          %v1312 = vsel %vm622, %v1031, 0
          %v1315 = vsel %vm622, %v1032, 0
          %v1318 = vsel %vm622, %v1033, 0
          %v1321 = vsel %vm622, %v1034, 0
          %v1324 = vsel %vm622, %v1035, 0
          %v1327 = vsel %vm622, %v1036, 0
          %v1330 = vsel %vm622, %v1037, 0
          %v1333 = vsel %vm622, %v1038, 0
          %1335 = vmatprep.subr.mxu0 0.0
          %1336 = vmatpush1.msra.mxu0 %v597
          %1337 = vmatprep.subr.mxu0 0.0
          %1338 = vmatpush1.msra.mxu0 %v598
          %1339 = vmatprep.subr.mxu0 0.0
          %1340 = vmatpush1.msra.mxu0 %v599
          %1341 = vmatprep.subr.mxu0 0.0
          %1342 = vmatpush1.msra.mxu0 %v600
          %1343 = vmatprep.subr.mxu0 0.0
          %1344 = vmatpush1.msra.mxu0 %v601
          %1345 = vmatprep.subr.mxu0 0.0
          %1346 = vmatpush1.msra.mxu0 %v602
          %1347 = vmatprep.subr.mxu0 0.0
          %1348 = vmatpush1.msra.mxu0 %v603
          %1349 = vmatprep.subr.mxu0 0.0
          %1350 = vmatpush1.msra.mxu0 %v604
          %1351 = vmatprep.subr.mxu0 0.0
          %1352 = vmatpush1.msra.mxu0 0.0
          %1353 = vmatprep.subr.mxu0 0.0
          %1354 = vmatpush1.msra.mxu0 0.0
          %1355 = vmatprep.subr.mxu0 0.0
          %1356 = vmatpush1.msra.mxu0 0.0
          %1357 = vmatprep.subr.mxu0 0.0
          %1358 = vmatpush1.msra.mxu0 0.0
          %1359 = vmatprep.subr.mxu0 0.0
          %1360 = vmatpush1.msra.mxu0 0.0
          %1361 = vmatprep.subr.mxu0 0.0
          %1362 = vmatpush1.msra.mxu0 0.0
          %1363 = vmatprep.subr.mxu0 0.0
          %1364 = vmatpush1.msra.mxu0 0.0
          %1365 = vmatprep.subr.mxu0 0.0
          %1366 = vmatpush1.msra.mxu0 0.0
          %1367 = vmatprep.subr.mxu0 0.0
          %1368 = vmatpush1.msra.mxu0 0.0
          %1369 = vmatprep.subr.mxu0 0.0
          %1370 = vmatpush1.msra.mxu0 0.0
          %1371 = vmatprep.subr.mxu0 0.0
          %1372 = vmatpush1.msra.mxu0 0.0
          %1373 = vmatprep.subr.mxu0 0.0
          %1374 = vmatpush1.msra.mxu0 0.0
          %1375 = vmatprep.subr.mxu0 0.0
          %1376 = vmatpush1.msra.mxu0 0.0
          %1377 = vmatprep.subr.mxu0 0.0
          %1378 = vmatpush1.msra.mxu0 0.0
          %1379 = vmatprep.subr.mxu0 0.0
          %1380 = vmatpush1.msra.mxu0 0.0
          %1381 = vmatprep.subr.mxu0 0.0
          %1382 = vmatpush1.msra.mxu0 0.0
          %1383 = vmatprep.subr.mxu0 0.0
          %1384 = vmatpush1.msra.mxu0 0.0
          %1385 = vmatprep.subr.mxu0 0.0
          %1386 = vmatpush1.msra.mxu0 0.0
          %1387 = vmatprep.subr.mxu0 0.0
          %1388 = vmatpush1.msra.mxu0 0.0
          %1389 = vmatprep.subr.mxu0 0.0
          %1390 = vmatpush1.msra.mxu0 0.0
          %1391 = vmatprep.subr.mxu0 0.0
          %1392 = vmatpush1.msra.mxu0 0.0
          %1393 = vmatprep.subr.mxu0 0.0
          %1394 = vmatpush1.msra.mxu0 0.0
          %1395 = vmatprep.subr.mxu0 0.0
          %1396 = vmatpush1.msra.mxu0 0.0
          %1397 = vmatprep.subr.mxu0 0.0
          %1398 = vmatpush1.msra.mxu0 0.0
          %1399 = vmatprep.mubr.f32.mxu0 0.0
          %1400 = vmatmul.mubr.f32.gmra.mrb[0].mxu0 %v1288
          %v1401 = vpop.f32.mrb[0].mxu0
          %v1402 = vadd.f32 0.0, %v1401
          %v1403 = vpop.f32.mrb[0].mxu0
          %1404 = vmatprep.mubr.f32.mxu0 0.0
          %1405 = vmatmul.mubr.f32.gmra.mrb[0].mxu0 %v1291
          %v1406 = vpop.f32.mrb[0].mxu0
          %v1407 = vadd.f32 0.0, %v1406
          %v1408 = vpop.f32.mrb[0].mxu0
          %1409 = vmatprep.mubr.f32.mxu0 0.0
          %1410 = vmatmul.mubr.f32.gmra.mrb[0].mxu0 %v1294
          %v1411 = vpop.f32.mrb[0].mxu0
          %v1412 = vadd.f32 0.0, %v1411
          %v1413 = vpop.f32.mrb[0].mxu0
          %1414 = vmatprep.mubr.f32.mxu0 0.0
          %1415 = vmatmul.mubr.f32.gmra.mrb[0].mxu0 %v1297
          %v1416 = vpop.f32.mrb[0].mxu0
          %v1417 = vadd.f32 0.0, %v1416
          %v1418 = vpop.f32.mrb[0].mxu0
          %1419 = vmatprep.mubr.f32.mxu0 0.0
          %1420 = vmatmul.mubr.f32.gmra.mrb[0].mxu0 %v1300
          %v1421 = vpop.f32.mrb[0].mxu0
          %v1422 = vadd.f32 0.0, %v1421
          %v1423 = vpop.f32.mrb[0].mxu0
          %1424 = vmatprep.mubr.f32.mxu0 0.0
          %1425 = vmatmul.mubr.f32.gmra.mrb[0].mxu0 %v1303
          %v1426 = vpop.f32.mrb[0].mxu0
          %v1427 = vadd.f32 0.0, %v1426
          %v1428 = vpop.f32.mrb[0].mxu0
          %1429 = vmatprep.mubr.f32.mxu0 0.0
          %1430 = vmatmul.mubr.f32.gmra.mrb[0].mxu0 %v1306
          %v1431 = vpop.f32.mrb[0].mxu0
          %v1432 = vadd.f32 0.0, %v1431
          %v1433 = vpop.f32.mrb[0].mxu0
          %1434 = vmatprep.mubr.f32.mxu0 0.0
          %1435 = vmatmul.mubr.f32.gmra.mrb[0].mxu0 %v1309
          %v1436 = vpop.f32.mrb[0].mxu0
          %v1437 = vadd.f32 0.0, %v1436
          %v1438 = vpop.f32.mrb[0].mxu0
          %1439 = vmatprep.mubr.f32.mxu0 0.0
          %1440 = vmatmul.mubr.f32.gmra.mrb[0].mxu0 %v1312
          %v1441 = vpop.f32.mrb[0].mxu0
          %v1442 = vadd.f32 0.0, %v1441
          %v1443 = vpop.f32.mrb[0].mxu0
          %1444 = vmatprep.mubr.f32.mxu0 0.0
          %1445 = vmatmul.mubr.f32.gmra.mrb[0].mxu0 %v1315
          %v1446 = vpop.f32.mrb[0].mxu0
          %v1447 = vadd.f32 0.0, %v1446
          %v1448 = vpop.f32.mrb[0].mxu0
          %1449 = vmatprep.mubr.f32.mxu0 0.0
          %1450 = vmatmul.mubr.f32.gmra.mrb[0].mxu0 %v1318
          %v1451 = vpop.f32.mrb[0].mxu0
          %v1452 = vadd.f32 0.0, %v1451
          %v1453 = vpop.f32.mrb[0].mxu0
          %1454 = vmatprep.mubr.f32.mxu0 0.0
          %1455 = vmatmul.mubr.f32.gmra.mrb[0].mxu0 %v1321
          %v1456 = vpop.f32.mrb[0].mxu0
          %v1457 = vadd.f32 0.0, %v1456
          %v1458 = vpop.f32.mrb[0].mxu0
          %1459 = vmatprep.mubr.f32.mxu0 0.0
          %1460 = vmatmul.mubr.f32.gmra.mrb[0].mxu0 %v1324
          %v1461 = vpop.f32.mrb[0].mxu0
          %v1462 = vadd.f32 0.0, %v1461
          %v1463 = vpop.f32.mrb[0].mxu0
          %1464 = vmatprep.mubr.f32.mxu0 0.0
          %1465 = vmatmul.mubr.f32.gmra.mrb[0].mxu0 %v1327
          %v1466 = vpop.f32.mrb[0].mxu0
          %v1467 = vadd.f32 0.0, %v1466
          %v1468 = vpop.f32.mrb[0].mxu0
          %1469 = vmatprep.mubr.f32.mxu0 0.0
          %1470 = vmatmul.mubr.f32.gmra.mrb[0].mxu0 %v1330
          %v1471 = vpop.f32.mrb[0].mxu0
          %v1472 = vadd.f32 0.0, %v1471
          %v1473 = vpop.f32.mrb[0].mxu0
          %1474 = vmatprep.mubr.f32.mxu0 0.0
          %1475 = vmatmul.mubr.f32.gmra.mrb[0].mxu0 %v1333
          %v1476 = vpop.f32.mrb[0].mxu0
          %v1477 = vadd.f32 0.0, %v1476
          %v1478 = vpop.f32.mrb[0].mxu0
          %1479 = vdwg.mxu0
          %v1480 = vmul.f32 %v1402, 0.5
          %v1481 = vmul.f32 %v1407, 0.5
          %v1482 = vmul.f32 %v1412, 0.5
          %v1483 = vmul.f32 %v1417, 0.5
          %v1484 = vmul.f32 %v1422, 0.5
          %v1485 = vmul.f32 %v1427, 0.5
          %v1486 = vmul.f32 %v1432, 0.5
          %v1487 = vmul.f32 %v1437, 0.5
          %v1488 = vmul.f32 %v1442, 0.5
          %v1489 = vmul.f32 %v1447, 0.5
          %v1490 = vmul.f32 %v1452, 0.5
          %v1491 = vmul.f32 %v1457, 0.5
          %v1492 = vmul.f32 %v1462, 0.5
          %v1493 = vmul.f32 %v1467, 0.5
          %v1494 = vmul.f32 %v1472, 0.5
          %v1495 = vmul.f32 %v1477, 0.5
          %1497 = vset.pattern.permute.xlu0 0
          %1498 = vperm.xlu0 %1497, %v1040
          %v1499 = vpop.permute.xlu0 %1498
          %1502 = vset.pattern.permute.xlu0 0
          %1503 = vperm.xlu0 %1502, %v1041
          %v1504 = vpop.permute.xlu0 %1503
          %1507 = vset.pattern.permute.xlu0 0
          %1508 = vperm.xlu0 %1507, %v1042
          %v1509 = vpop.permute.xlu0 %1508
          %1512 = vset.pattern.permute.xlu0 0
          %1513 = vperm.xlu0 %1512, %v1043
          %v1514 = vpop.permute.xlu0 %1513
          %1517 = vset.pattern.permute.xlu0 0
          %1518 = vperm.xlu0 %1517, %v1044
          %v1519 = vpop.permute.xlu0 %1518
          %1522 = vset.pattern.permute.xlu0 0
          %1523 = vperm.xlu0 %1522, %v1045
          %v1524 = vpop.permute.xlu0 %1523
          %1527 = vset.pattern.permute.xlu0 0
          %1528 = vperm.xlu0 %1527, %v1046
          %v1529 = vpop.permute.xlu0 %1528
          %1532 = vset.pattern.permute.xlu0 0
          %1533 = vperm.xlu0 %1532, %v1047
          %v1534 = vpop.permute.xlu0 %1533
          %1537 = vset.pattern.permute.xlu0 0
          %1538 = vperm.xlu0 %1537, %v1048
          %v1539 = vpop.permute.xlu0 %1538
          %1542 = vset.pattern.permute.xlu0 0
          %1543 = vperm.xlu0 %1542, %v1049
          %v1544 = vpop.permute.xlu0 %1543
          %1547 = vset.pattern.permute.xlu0 0
          %1548 = vperm.xlu0 %1547, %v1050
          %v1549 = vpop.permute.xlu0 %1548
          %1552 = vset.pattern.permute.xlu0 0
          %1553 = vperm.xlu0 %1552, %v1051
          %v1554 = vpop.permute.xlu0 %1553
          %1557 = vset.pattern.permute.xlu0 0
          %1558 = vperm.xlu0 %1557, %v1052
          %v1559 = vpop.permute.xlu0 %1558
          %1562 = vset.pattern.permute.xlu0 0
          %1563 = vperm.xlu0 %1562, %v1053
          %v1564 = vpop.permute.xlu0 %1563
          %1567 = vset.pattern.permute.xlu0 0
          %1568 = vperm.xlu0 %1567, %v1054
          %v1569 = vpop.permute.xlu0 %1568
          %1572 = vset.pattern.permute.xlu0 0
          %1573 = vperm.xlu0 %1572, %v1055
          %v1574 = vpop.permute.xlu0 %1573
          %v1576 = vsub.f32 %v1480, %v1499
          %v1577 = vsub.f32 %v1481, %v1504
          %v1578 = vsub.f32 %v1482, %v1509
          %v1579 = vsub.f32 %v1483, %v1514
          %v1580 = vsub.f32 %v1484, %v1519
          %v1581 = vsub.f32 %v1485, %v1524
          %v1582 = vsub.f32 %v1486, %v1529
          %v1583 = vsub.f32 %v1487, %v1534
          %v1584 = vsub.f32 %v1488, %v1539
          %v1585 = vsub.f32 %v1489, %v1544
          %v1586 = vsub.f32 %v1490, %v1549
          %v1587 = vsub.f32 %v1491, %v1554
          %v1588 = vsub.f32 %v1492, %v1559
          %v1589 = vsub.f32 %v1493, %v1564
          %v1590 = vsub.f32 %v1494, %v1569
          %v1591 = vsub.f32 %v1495, %v1574
          %v1592 = vsub.f32 %v1576, %v933
          %v1593 = vsub.f32 %v1577, %v933
          %v1594 = vsub.f32 %v1578, %v933
          %v1595 = vsub.f32 %v1579, %v933
          %v1596 = vsub.f32 %v1580, %v933
          %v1597 = vsub.f32 %v1581, %v933
          %v1598 = vsub.f32 %v1582, %v933
          %v1599 = vsub.f32 %v1583, %v933
          %v1600 = vsub.f32 %v1584, %v933
          %v1601 = vsub.f32 %v1585, %v933
          %v1602 = vsub.f32 %v1586, %v933
          %v1603 = vsub.f32 %v1587, %v933
          %v1604 = vsub.f32 %v1588, %v933
          %v1605 = vsub.f32 %v1589, %v933
          %v1606 = vsub.f32 %v1590, %v933
          %v1607 = vsub.f32 %v1591, %v933
          %v1608 = vmul.f32 %v1592, 1.442695
          %v1609 = vpow.pop %v1608
          %v1610 = vmul.f32 %v1593, 1.442695
          %v1611 = vpow.pop %v1610
          %v1612 = vmul.f32 %v1594, 1.442695
          %v1613 = vpow.pop %v1612
          %v1614 = vmul.f32 %v1595, 1.442695
          %v1615 = vpow.pop %v1614
          %v1616 = vmul.f32 %v1596, 1.442695
          %v1617 = vpow.pop %v1616
          %v1618 = vmul.f32 %v1597, 1.442695
          %v1619 = vpow.pop %v1618
          %v1620 = vmul.f32 %v1598, 1.442695
          %v1621 = vpow.pop %v1620
          %v1622 = vmul.f32 %v1599, 1.442695
          %v1623 = vpow.pop %v1622
          %v1624 = vmul.f32 %v1600, 1.442695
          %v1625 = vpow.pop %v1624
          %v1626 = vmul.f32 %v1601, 1.442695
          %v1627 = vpow.pop %v1626
          %v1628 = vmul.f32 %v1602, 1.442695
          %v1629 = vpow.pop %v1628
          %v1630 = vmul.f32 %v1603, 1.442695
          %v1631 = vpow.pop %v1630
          %v1632 = vmul.f32 %v1604, 1.442695
          %v1633 = vpow.pop %v1632
          %v1634 = vmul.f32 %v1605, 1.442695
          %v1635 = vpow.pop %v1634
          %v1636 = vmul.f32 %v1606, 1.442695
          %v1637 = vpow.pop %v1636
          %v1638 = vmul.f32 %v1607, 1.442695
          %v1639 = vpow.pop %v1638
          %p1640 = scmp.eq.s32.totalorder %s26, %s27
          %s1641 = scalar_select %p1640, 1.0, 2.0
          %v1642 = vld [vmem:[%s545] sm:$0xff]
          %v1643 = vadd.f32 %v1256, %v1609
          %v1644 = vadd.f32 %v1258, %v1611
          %v1645 = vadd.f32 %v1260, %v1613
          %v1646 = vadd.f32 %v1262, %v1615
          %v1647 = vadd.f32 %v1264, %v1617
          %v1648 = vadd.f32 %v1266, %v1619
          %v1649 = vadd.f32 %v1268, %v1621
          %v1650 = vadd.f32 %v1270, %v1623
          %v1651 = vadd.f32 %v1272, %v1625
          %v1652 = vadd.f32 %v1274, %v1627
          %v1653 = vadd.f32 %v1276, %v1629
          %v1654 = vadd.f32 %v1278, %v1631
          %v1655 = vadd.f32 %v1280, %v1633
          %v1656 = vadd.f32 %v1282, %v1635
          %v1657 = vadd.f32 %v1284, %v1637
          %v1658 = vadd.f32 %v1286, %v1639
          %v1659 = vadd.f32 %v1643, %v1644
          %v1660 = vadd.f32 %v1659, %v1645
          %v1661 = vadd.f32 %v1660, %v1646
          %v1662 = vadd.f32 %v1661, %v1647
          %v1663 = vadd.f32 %v1662, %v1648
          %v1664 = vadd.f32 %v1663, %v1649
          %v1665 = vadd.f32 %v1664, %v1650
          %v1666 = vadd.f32 %v1665, %v1651
          %v1667 = vadd.f32 %v1666, %v1652
          %v1668 = vadd.f32 %v1667, %v1653
          %v1669 = vadd.f32 %v1668, %v1654
          %v1670 = vadd.f32 %v1669, %v1655
          %v1671 = vadd.f32 %v1670, %v1656
          %v1672 = vadd.f32 %v1671, %v1657
          %v1673 = vadd.f32 %v1672, %v1658
          %1674 = vadd.xlane.f32.xlu0 %v1673
          %v1675 = vpop.xlane.xlu0 %1674
          %v1676 = vrot.slane %v1675, 4
          %v1677 = vadd.f32 %v1675, %v1676
          %v1678 = vrot.slane %v1677, 2
          %v1679 = vadd.f32 %v1677, %v1678
          %v1680 = vrot.slane %v1679, 1
          %v1681 = vadd.f32 %v1679, %v1680
          %s1682 = vtos %v1681
          %s1683 = smul.f32 %s1641, %s1682
          %v1684 = vstv %s1683
          %v1685 = vadd.f32 %v1642, %v1684
          %1686 = vst [vmem:[%s545] sm:$0xff] %v1685
        $region136: #{tpu_custom_call.1} parent=119 // pred_fallthru
          _
        %s1687 = sand.u32 %s250, 1
        %s1688 = scalar_lea.sflag [#allocation5], %s1687
        %s1689 = sand.u32 %s250, 1
        %s1690 = smul.addr %s1689, 8
        %s1691 = scalar_lea.vmem [#allocation4], %s1690
        // Predicated region
        $region137: #{tpu_custom_call.1} parent=119 // pred_check
          %p1692 = pneg %p260
        $region138: #{tpu_custom_call.1} parent=119 // pred_check_branch
          %1694 = sbr.rel (%p1692) target = $region140
        $region139: #{tpu_custom_call.1} parent=119 // pred_region
          %s1696 = ssub.s32 128, 128
          %1697 = vsyncadd %s1688, %s1696
          %s1698 = smul.addr %s26, 128
          %s1699 = scalar_lea.hbm %s8, %s1698
          %s1701 = sshll.u32 %s1691, 4
          %s1702 = int_to_ptr.vmem [resolvable:$true] %s1701
          %1704 = dma.vmem_to_hbm [thread:$0]  %s1702, 128, %s1699, %s1688
        $region140: #{tpu_custom_call.1} parent=119 // pred_fallthru
          _
      $region120: #{tpu_custom_call.1} parent=5 // pred_fallthru
        _
      %p1705 = scmp.le.s32.totalorder 2, %s17
      // Predicated region
      $region141: #{tpu_custom_call.1} parent=5 // pred_check
        %p1706 = pneg %p1705
      $region142: #{tpu_custom_call.1} parent=5 // pred_check_branch
        %1708 = sbr.rel (%p1706) target = $region144
      $region143: #{tpu_custom_call.1} parent=5 // pred_region
        %s1709 = ssub.s32 %s17, 2
        // Predicated region
        $region145: #{tpu_custom_call.1} parent=143 // pred_check
          %p1710 = pneg %p266
        $region146: #{tpu_custom_call.1} parent=143 // pred_check_branch
          %1712 = sbr.rel (%p1710) target = $region148
        $region147: #{tpu_custom_call.1} parent=143 // pred_region
          %s1713 = sand.u32 %s251, 1
          %s1714 = scalar_lea.sflag [#allocation5], %s1713
          %s1715 = sand.u32 %s251, 1
          %s1716 = smul.addr %s1715, 8
          %s1717 = scalar_lea.vmem [#allocation4], %s1716
          %1718 = dma.done %s1714, 128
        $region148: #{tpu_custom_call.1} parent=143 // pred_fallthru
          _
      $region144: #{tpu_custom_call.1} parent=5 // pred_fallthru
        _
    $region6: #{tpu_custom_call.1} parent=1 // loop_footer
      %s21 = sadd.s32 1, %s17
    $region7: #{tpu_custom_call.1} parent=1 // loop_footer_branch
      %16 = sbr.rel target = $region3
    $region8: #{tpu_custom_call.1} parent=1 // loop_exit
      _
    %1719 = vsyncpa [#allocation5], 1
    %s1720 = scalar_lea.sflag [#allocation5], 1
    %1721 = vsyncpa %s1720, 1

</llo_original>
